<compile_context>
chip_gen: v5e
topology: v5e:2x2
jax: 0.10.0
libtpu: 0.0.40
codegen_flags: <defaults>
</compile_context>

<pallas_src>
import functools

import jax
import jax.numpy as jnp
from jax.experimental import pallas as pl
from jax.experimental.pallas import tpu as pltpu

_EPS = 1e-5


# ----------------------------------------------------------------------------- kernel

def _bottleneck_kernel(x_ref, w1_ref, w2_ref, w3_ref, b1_ref, b2_ref, b3_ref,
                       o_ref, pad_ref, col_ref, *,
                       stride, H, W, Ho, Wo, has_proj):
    """Fused bottleneck block for one image (NHWC inside the kernel).

    x_ref   (1, H, W, Cin)  bf16
    w1_ref  (Cin, P)        bf16, BN1 scale folded in
    w2_ref  (9*P, P)        bf16, HWIO 3x3 weights im2col-reshaped, BN2 folded
    w3_ref  (P+Cin, E) or (P, E)  bf16, BN3 (and shortcut BN) folded
    b*_ref  (1, C)          f32 folded BN biases (b3 already includes bsc)
    o_ref   (1, Ho*Wo, E)
    pad_ref VMEM (H+2, Wpad, P) f32   conv2 halo buffer
    col_ref VMEM (Ho*Wo, 9*P)  bf16   im2col slab
    """
    Cin = x_ref.shape[-1]
    P = w1_ref.shape[-1]
    Wpad = pad_ref.shape[1]

    x = x_ref[0]                                        # (H, W, Cin) bf16
    x2d = x.reshape(H * W, Cin)

    # ---- conv1 (1x1) + bn1 + relu (scale pre-folded into w1) -----------------
    y1 = jnp.dot(x2d, w1_ref[...], preferred_element_type=jnp.float32)
    y1 = jnp.maximum(y1 + b1_ref[0], 0.0)               # (H*W, P) f32

    # ---- halo buffer: zero only the border strips, overwrite the interior ----
    pad_ref[pl.ds(0, 1), :, :] = jnp.zeros((1, Wpad, P), pad_ref.dtype)
    pad_ref[pl.ds(H + 1, 1), :, :] = jnp.zeros((1, Wpad, P), pad_ref.dtype)
    pad_ref[:, pl.ds(0, 1), :] = jnp.zeros((H + 2, 1, P), pad_ref.dtype)
    pad_ref[:, pl.ds(W + 1, Wpad - W - 1), :] = jnp.zeros(
        (H + 2, Wpad - W - 1, P), pad_ref.dtype)
    pad_ref[pl.ds(1, H), pl.ds(1, W), :] = y1.reshape(H, W, P).astype(pad_ref.dtype)
    # TODO(synk): switch the halo buffer to bf16 once packed sublane-offset
    #             stores are validated on the target toolchain (halves its VMEM).
    t = pad_ref[...]                                    # (H+2, Wpad, P) f32

    # ---- conv2 (3x3, stride) + bn2 + relu: im2col written straight into VMEM -
    for kh in range(3):
        for kw in range(3):
            if stride == 1:
                patch = t[kh:kh + Ho, kw:kw + Wo, :]
            else:
                patch = jax.lax.slice(
                    t, (kh, kw, 0),
                    (kh + (Ho - 1) * stride + 1, kw + (Wo - 1) * stride + 1, P),
                    (stride, stride, 1))
            idx = kh * 3 + kw
            col_ref[:, idx * P:(idx + 1) * P] = (
                patch.reshape(Ho * Wo, P).astype(col_ref.dtype))
    y2 = jnp.dot(col_ref[...], w2_ref[...], preferred_element_type=jnp.float32)
    y2 = jnp.maximum(y2 + b2_ref[0], 0.0)               # (Ho*Wo, P) f32

    # ---- conv3 (1x1) + bn3 [+ projection shortcut] fused into ONE matmul -----
    # TODO(synk): nn.Dropout is identity in eval mode; training-mode mask not implemented.
    if has_proj:
        if stride == 1:
            xs = x2d
        else:
            xs = jax.lax.slice(
                x, (0, 0, 0),
                ((Ho - 1) * stride + 1, (Wo - 1) * stride + 1, Cin),
                (stride, stride, 1)).reshape(Ho * Wo, Cin)
        lhs = jnp.concatenate([y2.astype(w3_ref.dtype), xs], axis=-1)  # (Ho*Wo, P+Cin)
        y3 = jnp.dot(lhs, w3_ref[...], preferred_element_type=jnp.float32) + b3_ref[0]
    else:
        y3 = jnp.dot(y2.astype(w3_ref.dtype), w3_ref[...],
                     preferred_element_type=jnp.float32) + b3_ref[0]
        y3 = y3 + x2d.astype(jnp.float32)               # identity: Cin == E, stride == 1

    # ---- residual already included; final relu, lane-flat store --------------
    o_ref[0] = jnp.maximum(y3, 0.0).astype(o_ref.dtype)


# ----------------------------------------------------------------------------- prep

def _fold_bn(gamma, beta, mean, var):
    scale = gamma / jnp.sqrt(var + _EPS)
    bias = beta - mean * scale
    return scale, bias


def _prepare(params):
    """Fold eval-mode BatchNorm into the conv weights (host side, f32 math),
    then cast the folded weights to bf16 for the MXU; biases stay f32."""
    s1, b1 = _fold_bn(params["gamma1"], params["beta1"], params["mean1"], params["var1"])
    s2, b2 = _fold_bn(params["gamma2"], params["beta2"], params["mean2"], params["var2"])
    s3, b3 = _fold_bn(params["gamma3"], params["beta3"], params["mean3"], params["var3"])
    prep = {
        "w1s": (params["w1"] * s1).astype(jnp.bfloat16),        # (Cin, P)
        "b1": b1.astype(jnp.float32),
        "w2s": (params["w2"] * s2).astype(jnp.bfloat16),        # (3, 3, P, P) HWIO
        "b2": b2.astype(jnp.float32),
        "w3s": (params["w3"] * s3).astype(jnp.bfloat16),        # (P, E)
        "b3": b3.astype(jnp.float32),
    }
    if "wsc" in params:
        ssc, bsc = _fold_bn(params["gammasc"], params["betasc"],
                            params["meansc"], params["varsc"])
        prep["wscs"] = (params["wsc"] * ssc).astype(jnp.bfloat16)  # (Cin, E)
        prep["bsc"] = bsc.astype(jnp.float32)
    return prep


# ----------------------------------------------------------------------------- wrapper

def bottleneck_forward(params, x_nchw, *, stride=1):
    N, Cin, H, W = x_nchw.shape
    P = params["w1"].shape[-1]
    E = params["w3"].shape[-1]
    Ho = (H + 2 - 3) // stride + 1
    Wo = (W + 2 - 3) // stride + 1
    has_proj = "wsc" in params
    if not has_proj:
        assert stride == 1 and Cin == E, (
            "identity shortcut requires stride == 1 and in_planes == expansion*planes")

    prep = _prepare(params)

    # TODO(synk): when stacking blocks, keep activations NHWC/bf16 between blocks
    #             so this transpose (an extra HBM round trip) disappears.
    x = jnp.transpose(x_nchw, (0, 2, 3, 1)).astype(jnp.bfloat16)   # NHWC bf16

    w2r = prep["w2s"].reshape(9 * P, P)                 # (kh, kw, ci) im2col order
    if has_proj:
        wcat = jnp.concatenate([prep["w3s"], prep["wscs"]], axis=0)   # (P+Cin, E)
        bcat = (prep["b3"] + prep["bsc"]).reshape(1, E)
        Kc = P + Cin
    else:
        wcat = prep["w3s"]
        bcat = prep["b3"].reshape(1, E)
        Kc = P

    Wpad = ((W + 2 + 7) // 8) * 8                       # sublane-align the halo buffer

    inputs = [
        x, prep["w1s"], w2r, wcat,
        prep["b1"].reshape(1, P), prep["b2"].reshape(1, P), bcat,
    ]
    in_specs = [
        pl.BlockSpec((1, H, W, Cin), lambda n: (n, 0, 0, 0)),
        pl.BlockSpec((Cin, P), lambda n: (0, 0)),
        pl.BlockSpec((9 * P, P), lambda n: (0, 0)),
        pl.BlockSpec((Kc, E), lambda n: (0, 0)),
        pl.BlockSpec((1, P), lambda n: (0, 0)),
        pl.BlockSpec((1, P), lambda n: (0, 0)),
        pl.BlockSpec((1, E), lambda n: (0, 0)),
    ]

    kernel = functools.partial(_bottleneck_kernel, stride=stride,
                               H=H, W=W, Ho=Ho, Wo=Wo, has_proj=has_proj)

    # Cap the VMEM request at ~75% of physical VMEM (v7x has only 64 MiB/TC).
    vmem_limit = 48 * 1024 * 1024
    try:
        cap = int(pltpu.get_tpu_info().vmem_capacity_bytes)
        vmem_limit = min(vmem_limit, cap * 3 // 4)
    except Exception:
        pass

    out = pl.pallas_call(
        kernel,
        out_shape=jax.ShapeDtypeStruct((N, Ho * Wo, E), x_nchw.dtype),
        grid_spec=pltpu.PrefetchScalarGridSpec(
            num_scalar_prefetch=0,
            grid=(N,),
            in_specs=in_specs,
            out_specs=pl.BlockSpec((1, Ho * Wo, E), lambda n: (n, 0, 0)),
            scratch_shapes=[
                pltpu.VMEM((H + 2, Wpad, P), jnp.float32),      # conv2 halo buffer
                pltpu.VMEM((Ho * Wo, 9 * P), jnp.bfloat16),     # im2col slab
            ],
        ),
        compiler_params=pltpu.CompilerParams(
            dimension_semantics=("parallel",),
            vmem_limit_bytes=vmem_limit,
        ),
    )(*inputs)

    out = out.reshape(N, Ho, Wo, E)
    return jnp.transpose(out, (0, 3, 1, 2))             # NHWC -> NCHW


# ----------------------------------------------------------------------------- params

def init_bottleneck(key, in_planes, planes, stride=1, expansion=4):
    E = expansion * planes
    ks = jax.random.split(key, 16)
    p = {
        "w1": 0.1 * jax.random.normal(ks[0], (in_planes, planes), jnp.float32),
        "gamma1": 1.0 + 0.1 * jax.random.normal(ks[1], (planes,), jnp.float32),
        "beta1": 0.1 * jax.random.normal(ks[2], (planes,), jnp.float32),
        "mean1": 0.1 * jax.random.normal(ks[3], (planes,), jnp.float32),
        "var1": 1.0 + 0.1 * jnp.abs(jax.random.normal(ks[4], (planes,), jnp.float32)),
        "w2": 0.1 * jax.random.normal(ks[5], (3, 3, planes, planes), jnp.float32),
        "gamma2": 1.0 + 0.1 * jax.random.normal(ks[6], (planes,), jnp.float32),
        "beta2": 0.1 * jax.random.normal(ks[7], (planes,), jnp.float32),
        "mean2": 0.1 * jax.random.normal(ks[8], (planes,), jnp.float32),
        "var2": 1.0 + 0.1 * jnp.abs(jax.random.normal(ks[9], (planes,), jnp.float32)),
        "w3": 0.1 * jax.random.normal(ks[10], (planes, E), jnp.float32),
        "gamma3": 1.0 + 0.1 * jax.random.normal(ks[11], (E,), jnp.float32),
        "beta3": 0.1 * jax.random.normal(ks[12], (E,), jnp.float32),
        "mean3": 0.1 * jax.random.normal(ks[13], (E,), jnp.float32),
        "var3": 1.0 + 0.1 * jnp.abs(jax.random.normal(ks[14], (E,), jnp.float32)),
    }
    if stride != 1 or in_planes != E:
        kk = jax.random.split(ks[15], 5)
        p["wsc"] = 0.1 * jax.random.normal(kk[0], (in_planes, E), jnp.float32)
        p["gammasc"] = 1.0 + 0.1 * jax.random.normal(kk[1], (E,), jnp.float32)
        p["betasc"] = 0.1 * jax.random.normal(kk[2], (E,), jnp.float32)
        p["meansc"] = 0.1 * jax.random.normal(kk[3], (E,), jnp.float32)
        p["varsc"] = 1.0 + 0.1 * jnp.abs(jax.random.normal(kk[4], (E,), jnp.float32))
    return p


# ----------------------------------------------------------------------------- reference

def _ref_forward(prep, x_nchw, *, stride=1, has_proj=True):
    """Pure-JAX reference using the SAME folded/bf16-cast operands as the kernel,
    with bf16 rounding between stages, so the comparison is apples-to-apples."""
    f32 = jnp.float32
    x = jnp.transpose(x_nchw, (0, 2, 3, 1)).astype(jnp.bfloat16).astype(f32)

    out = jnp.maximum(
        jnp.einsum("nhwc,cd->nhwd", x, prep["w1s"].astype(f32)) + prep["b1"], 0.0)
    out = out.astype(jnp.bfloat16).astype(f32)
    out = jax.lax.conv_general_dilated(
        out, prep["w2s"].astype(f32), (stride, stride), ((1, 1), (1, 1)),
        dimension_numbers=("NHWC", "HWIO", "NHWC"))
    out = jnp.maximum(out + prep["b2"], 0.0)
    out = out.astype(jnp.bfloat16).astype(f32)
    y3 = jnp.einsum("nhwc,cd->nhwd", out, prep["w3s"].astype(f32)) + prep["b3"]
    if has_proj:
        sc = jnp.einsum("nhwc,cd->nhwd", x[:, ::stride, ::stride, :],
                        prep["wscs"].astype(f32)) + prep["bsc"]
    else:
        sc = x
    out = jnp.maximum(y3 + sc, 0.0)
    return jnp.transpose(out, (0, 3, 1, 2))


# ----------------------------------------------------------------------------- main

if __name__ == "__main__":
    key = jax.random.PRNGKey(0)
    k_param, k_x = jax.random.split(key)

    in_planes, planes, stride = 4, 8, 1     # E = 32 != in_planes -> projection shortcut
    N, H, W = 2, 16, 16

    params = init_bottleneck(k_param, in_planes, planes, stride=stride)
    x = jax.random.normal(k_x, (N, in_planes, H, W), jnp.float32)

    out = jax.block_until_ready(bottleneck_forward(params, x, stride=stride))

    prep = _prepare(params)
    ref = jax.block_until_ready(
        _ref_forward(prep, x, stride=stride, has_proj="wsc" in params))

    Ho = (H + 2 - 3) // stride + 1
    assert out.shape == (N, 4 * planes, Ho, Ho), out.shape
    err = float(jnp.max(jnp.abs(out - ref)))
    assert err < 2e-2, f"max abs err {err}"

    print("KERNEL_OK")
</pallas_src>

<mosaic_0001>
module attributes {stable_mosaic.version = 11 : i64} {
  func.func @_bottleneck_kernel(%arg0: i32, %arg1: memref<1x16x16x4xbf16, #tpu.memory_space<vmem>>, %arg2: memref<4x8xbf16, #tpu.memory_space<vmem>>, %arg3: memref<72x8xbf16, #tpu.memory_space<vmem>>, %arg4: memref<12x32xbf16, #tpu.memory_space<vmem>>, %arg5: memref<1x8xf32, #tpu.memory_space<vmem>>, %arg6: memref<1x8xf32, #tpu.memory_space<vmem>>, %arg7: memref<1x32xf32, #tpu.memory_space<vmem>>, %arg8: memref<1x256x32xf32, #tpu.memory_space<vmem>>, %arg9: memref<18x24x8xf32, #tpu.memory_space<vmem>>, %arg10: memref<256x72xbf16, #tpu.memory_space<vmem>>) attributes {dimension_semantics = [#tpu.dimension_semantics<parallel>], iteration_bounds = array<i64: 2>, scalar_prefetch = 0 : i64, scratch_operands = 2 : i64, tpu.core_type = #tpu.core_type<tc>, window_params = [{transform_indices = @transform_0, window_bounds = array<i64: 1, 16, 16, 4>}, {pipeline_mode = #tpu.pipeline_mode<synchronous>, transform_indices = @transform_1, window_bounds = array<i64: 4, 8>}, {pipeline_mode = #tpu.pipeline_mode<synchronous>, transform_indices = @transform_2, window_bounds = array<i64: 72, 8>}, {pipeline_mode = #tpu.pipeline_mode<synchronous>, transform_indices = @transform_3, window_bounds = array<i64: 12, 32>}, {pipeline_mode = #tpu.pipeline_mode<synchronous>, transform_indices = @transform_4, window_bounds = array<i64: 1, 8>}, {pipeline_mode = #tpu.pipeline_mode<synchronous>, transform_indices = @transform_5, window_bounds = array<i64: 1, 8>}, {pipeline_mode = #tpu.pipeline_mode<synchronous>, transform_indices = @transform_6, window_bounds = array<i64: 1, 32>}, {transform_indices = @transform_7, window_bounds = array<i64: 1, 256, 32>}]} {
    %c0 = arith.constant 0 : index
    %c0_0 = arith.constant 0 : index
    %c0_1 = arith.constant 0 : index
    %c0_2 = arith.constant 0 : index
    %0 = vector.load %arg1[%c0, %c0_0, %c0_1, %c0_2] : memref<1x16x16x4xbf16, #tpu.memory_space<vmem>>, vector<1x16x16x4xbf16>
    %1 = vector.shape_cast %0 : vector<1x16x16x4xbf16> to vector<16x16x4xbf16>
    %2 = vector.shape_cast %1 : vector<16x16x4xbf16> to vector<256x4xbf16>
    %c0_3 = arith.constant 0 : index
    %c0_4 = arith.constant 0 : index
    %3 = vector.load %arg2[%c0_3, %c0_4] : memref<4x8xbf16, #tpu.memory_space<vmem>>, vector<4x8xbf16>
    %cst = arith.constant dense<0.000000e+00> : vector<256x8xf32>
    %4 = tpu.matmul %2, %3, %cst {dimension_numbers = #tpu.dot_dimension_numbers<[1], [0], [0], [1], [0, 0, 1, 1], [], []>} : vector<256x4xbf16>, vector<4x8xbf16>, vector<256x8xf32> -> vector<256x8xf32>
    %c0_5 = arith.constant 0 : index
    %c0_6 = arith.constant 0 : index
    %5 = vector.load %arg5[%c0_5, %c0_6] : memref<1x8xf32, #tpu.memory_space<vmem>>, vector<1x8xf32>
    %6 = vector.shape_cast %5 : vector<1x8xf32> to vector<8xf32>
    %7 = vector.shape_cast %6 : vector<8xf32> to vector<1x8xf32>
    %8 = vector.broadcast %7 : vector<1x8xf32> to vector<256x8xf32>
    %9 = arith.addf %4, %8 : vector<256x8xf32>
    %cst_7 = arith.constant 0.000000e+00 : f32
    %10 = vector.broadcast %cst_7 : f32 to vector<256x8xf32>
    %11 = arith.maximumf %9, %10 : vector<256x8xf32>
    %cst_8 = arith.constant 0.000000e+00 : f32
    %12 = vector.broadcast %cst_8 : f32 to vector<1x24x8xf32>
    %c0_9 = arith.constant 0 : index
    %c0_10 = arith.constant 0 : index
    %c0_11 = arith.constant 0 : index
    %13 = vector.load %arg9[%c0_9, %c0_10, %c0_11] : memref<18x24x8xf32, #tpu.memory_space<vmem>>, vector<1x24x8xf32>
    tpu.vector_store %arg9[%c0_9, %c0_10, %c0_11], %12 {strides = array<i32>} : memref<18x24x8xf32, #tpu.memory_space<vmem>>, vector<1x24x8xf32>,
    %cst_12 = arith.constant 0.000000e+00 : f32
    %14 = vector.broadcast %cst_12 : f32 to vector<1x24x8xf32>
    %c17 = arith.constant 17 : index
    %c0_13 = arith.constant 0 : index
    %c0_14 = arith.constant 0 : index
    %15 = vector.load %arg9[%c17, %c0_13, %c0_14] : memref<18x24x8xf32, #tpu.memory_space<vmem>>, vector<1x24x8xf32>
    tpu.vector_store %arg9[%c17, %c0_13, %c0_14], %14 {strides = array<i32>} : memref<18x24x8xf32, #tpu.memory_space<vmem>>, vector<1x24x8xf32>,
    %cst_15 = arith.constant 0.000000e+00 : f32
    %16 = vector.broadcast %cst_15 : f32 to vector<18x1x8xf32>
    %c0_16 = arith.constant 0 : index
    %c0_17 = arith.constant 0 : index
    %c0_18 = arith.constant 0 : index
    %17 = vector.load %arg9[%c0_16, %c0_17, %c0_18] : memref<18x24x8xf32, #tpu.memory_space<vmem>>, vector<18x1x8xf32>
    tpu.vector_store %arg9[%c0_16, %c0_17, %c0_18], %16 {strides = array<i32>} : memref<18x24x8xf32, #tpu.memory_space<vmem>>, vector<18x1x8xf32>,
    %cst_19 = arith.constant 0.000000e+00 : f32
    %18 = vector.broadcast %cst_19 : f32 to vector<18x7x8xf32>
    %c0_20 = arith.constant 0 : index
    %c17_21 = arith.constant 17 : index
    %c0_22 = arith.constant 0 : index
    %19 = vector.load %arg9[%c0_20, %c17_21, %c0_22] : memref<18x24x8xf32, #tpu.memory_space<vmem>>, vector<18x7x8xf32>
    tpu.vector_store %arg9[%c0_20, %c17_21, %c0_22], %18 {strides = array<i32>} : memref<18x24x8xf32, #tpu.memory_space<vmem>>, vector<18x7x8xf32>,
    %20 = vector.shape_cast %11 : vector<256x8xf32> to vector<16x16x8xf32>
    %c1 = arith.constant 1 : index
    %c1_23 = arith.constant 1 : index
    %c0_24 = arith.constant 0 : index
    %21 = vector.load %arg9[%c1, %c1_23, %c0_24] : memref<18x24x8xf32, #tpu.memory_space<vmem>>, vector<16x16x8xf32>
    tpu.vector_store %arg9[%c1, %c1_23, %c0_24], %20 {strides = array<i32>} : memref<18x24x8xf32, #tpu.memory_space<vmem>>, vector<16x16x8xf32>,
    %c0_25 = arith.constant 0 : index
    %c0_26 = arith.constant 0 : index
    %c0_27 = arith.constant 0 : index
    %22 = vector.load %arg9[%c0_25, %c0_26, %c0_27] : memref<18x24x8xf32, #tpu.memory_space<vmem>>, vector<18x24x8xf32>
    %23 = vector.extract_strided_slice %22 {offsets = [0, 0, 0], sizes = [16, 16, 8], strides = [1, 1, 1]} : vector<18x24x8xf32> to vector<16x16x8xf32>
    %24 = vector.shape_cast %23 : vector<16x16x8xf32> to vector<256x8xf32>
    %25 = arith.truncf %24 : vector<256x8xf32> to vector<256x8xbf16>
    %c0_28 = arith.constant 0 : index
    %c0_29 = arith.constant 0 : index
    %26 = vector.load %arg10[%c0_28, %c0_29] : memref<256x72xbf16, #tpu.memory_space<vmem>>, vector<256x8xbf16>
    tpu.vector_store %arg10[%c0_28, %c0_29], %25 {strides = array<i32>} : memref<256x72xbf16, #tpu.memory_space<vmem>>, vector<256x8xbf16>,
    %27 = vector.extract_strided_slice %22 {offsets = [0, 1, 0], sizes = [16, 16, 8], strides = [1, 1, 1]} : vector<18x24x8xf32> to vector<16x16x8xf32>
    %28 = vector.shape_cast %27 : vector<16x16x8xf32> to vector<256x8xf32>
    %29 = arith.truncf %28 : vector<256x8xf32> to vector<256x8xbf16>
    %c0_30 = arith.constant 0 : index
    %c8 = arith.constant 8 : index
    %30 = vector.load %arg10[%c0_30, %c8] : memref<256x72xbf16, #tpu.memory_space<vmem>>, vector<256x8xbf16>
    tpu.vector_store %arg10[%c0_30, %c8], %29 {strides = array<i32>} : memref<256x72xbf16, #tpu.memory_space<vmem>>, vector<256x8xbf16>,
    %31 = vector.extract_strided_slice %22 {offsets = [0, 2, 0], sizes = [16, 16, 8], strides = [1, 1, 1]} : vector<18x24x8xf32> to vector<16x16x8xf32>
    %32 = vector.shape_cast %31 : vector<16x16x8xf32> to vector<256x8xf32>
    %33 = arith.truncf %32 : vector<256x8xf32> to vector<256x8xbf16>
    %c0_31 = arith.constant 0 : index
    %c16 = arith.constant 16 : index
    %34 = vector.load %arg10[%c0_31, %c16] : memref<256x72xbf16, #tpu.memory_space<vmem>>, vector<256x8xbf16>
    tpu.vector_store %arg10[%c0_31, %c16], %33 {strides = array<i32>} : memref<256x72xbf16, #tpu.memory_space<vmem>>, vector<256x8xbf16>,
    %35 = vector.extract_strided_slice %22 {offsets = [1, 0, 0], sizes = [16, 16, 8], strides = [1, 1, 1]} : vector<18x24x8xf32> to vector<16x16x8xf32>
    %36 = vector.shape_cast %35 : vector<16x16x8xf32> to vector<256x8xf32>
    %37 = arith.truncf %36 : vector<256x8xf32> to vector<256x8xbf16>
    %c0_32 = arith.constant 0 : index
    %c24 = arith.constant 24 : index
    %38 = vector.load %arg10[%c0_32, %c24] : memref<256x72xbf16, #tpu.memory_space<vmem>>, vector<256x8xbf16>
    tpu.vector_store %arg10[%c0_32, %c24], %37 {strides = array<i32>} : memref<256x72xbf16, #tpu.memory_space<vmem>>, vector<256x8xbf16>,
    %39 = vector.extract_strided_slice %22 {offsets = [1, 1, 0], sizes = [16, 16, 8], strides = [1, 1, 1]} : vector<18x24x8xf32> to vector<16x16x8xf32>
    %40 = vector.shape_cast %39 : vector<16x16x8xf32> to vector<256x8xf32>
    %41 = arith.truncf %40 : vector<256x8xf32> to vector<256x8xbf16>
    %c0_33 = arith.constant 0 : index
    %c32 = arith.constant 32 : index
    %42 = vector.load %arg10[%c0_33, %c32] : memref<256x72xbf16, #tpu.memory_space<vmem>>, vector<256x8xbf16>
    tpu.vector_store %arg10[%c0_33, %c32], %41 {strides = array<i32>} : memref<256x72xbf16, #tpu.memory_space<vmem>>, vector<256x8xbf16>,
    %43 = vector.extract_strided_slice %22 {offsets = [1, 2, 0], sizes = [16, 16, 8], strides = [1, 1, 1]} : vector<18x24x8xf32> to vector<16x16x8xf32>
    %44 = vector.shape_cast %43 : vector<16x16x8xf32> to vector<256x8xf32>
    %45 = arith.truncf %44 : vector<256x8xf32> to vector<256x8xbf16>
    %c0_34 = arith.constant 0 : index
    %c40 = arith.constant 40 : index
    %46 = vector.load %arg10[%c0_34, %c40] : memref<256x72xbf16, #tpu.memory_space<vmem>>, vector<256x8xbf16>
    tpu.vector_store %arg10[%c0_34, %c40], %45 {strides = array<i32>} : memref<256x72xbf16, #tpu.memory_space<vmem>>, vector<256x8xbf16>,
    %47 = vector.extract_strided_slice %22 {offsets = [2, 0, 0], sizes = [16, 16, 8], strides = [1, 1, 1]} : vector<18x24x8xf32> to vector<16x16x8xf32>
    %48 = vector.shape_cast %47 : vector<16x16x8xf32> to vector<256x8xf32>
    %49 = arith.truncf %48 : vector<256x8xf32> to vector<256x8xbf16>
    %c0_35 = arith.constant 0 : index
    %c48 = arith.constant 48 : index
    %50 = vector.load %arg10[%c0_35, %c48] : memref<256x72xbf16, #tpu.memory_space<vmem>>, vector<256x8xbf16>
    tpu.vector_store %arg10[%c0_35, %c48], %49 {strides = array<i32>} : memref<256x72xbf16, #tpu.memory_space<vmem>>, vector<256x8xbf16>,
    %51 = vector.extract_strided_slice %22 {offsets = [2, 1, 0], sizes = [16, 16, 8], strides = [1, 1, 1]} : vector<18x24x8xf32> to vector<16x16x8xf32>
    %52 = vector.shape_cast %51 : vector<16x16x8xf32> to vector<256x8xf32>
    %53 = arith.truncf %52 : vector<256x8xf32> to vector<256x8xbf16>
    %c0_36 = arith.constant 0 : index
    %c56 = arith.constant 56 : index
    %54 = vector.load %arg10[%c0_36, %c56] : memref<256x72xbf16, #tpu.memory_space<vmem>>, vector<256x8xbf16>
    tpu.vector_store %arg10[%c0_36, %c56], %53 {strides = array<i32>} : memref<256x72xbf16, #tpu.memory_space<vmem>>, vector<256x8xbf16>,
    %55 = vector.extract_strided_slice %22 {offsets = [2, 2, 0], sizes = [16, 16, 8], strides = [1, 1, 1]} : vector<18x24x8xf32> to vector<16x16x8xf32>
    %56 = vector.shape_cast %55 : vector<16x16x8xf32> to vector<256x8xf32>
    %57 = arith.truncf %56 : vector<256x8xf32> to vector<256x8xbf16>
    %c0_37 = arith.constant 0 : index
    %c64 = arith.constant 64 : index
    %58 = vector.load %arg10[%c0_37, %c64] : memref<256x72xbf16, #tpu.memory_space<vmem>>, vector<256x8xbf16>
    tpu.vector_store %arg10[%c0_37, %c64], %57 {strides = array<i32>} : memref<256x72xbf16, #tpu.memory_space<vmem>>, vector<256x8xbf16>,
    %c0_38 = arith.constant 0 : index
    %c0_39 = arith.constant 0 : index
    %59 = vector.load %arg10[%c0_38, %c0_39] : memref<256x72xbf16, #tpu.memory_space<vmem>>, vector<256x72xbf16>
    %c0_40 = arith.constant 0 : index
    %c0_41 = arith.constant 0 : index
    %60 = vector.load %arg3[%c0_40, %c0_41] : memref<72x8xbf16, #tpu.memory_space<vmem>>, vector<72x8xbf16>
    %cst_42 = arith.constant dense<0.000000e+00> : vector<256x8xf32>
    %61 = tpu.matmul %59, %60, %cst_42 {dimension_numbers = #tpu.dot_dimension_numbers<[1], [0], [0], [1], [0, 0, 1, 1], [], []>} : vector<256x72xbf16>, vector<72x8xbf16>, vector<256x8xf32> -> vector<256x8xf32>
    %c0_43 = arith.constant 0 : index
    %c0_44 = arith.constant 0 : index
    %62 = vector.load %arg6[%c0_43, %c0_44] : memref<1x8xf32, #tpu.memory_space<vmem>>, vector<1x8xf32>
    %63 = vector.shape_cast %62 : vector<1x8xf32> to vector<8xf32>
    %64 = vector.shape_cast %63 : vector<8xf32> to vector<1x8xf32>
    %65 = vector.broadcast %64 : vector<1x8xf32> to vector<256x8xf32>
    %66 = arith.addf %61, %65 : vector<256x8xf32>
    %cst_45 = arith.constant 0.000000e+00 : f32
    %67 = vector.broadcast %cst_45 : f32 to vector<256x8xf32>
    %68 = arith.maximumf %66, %67 : vector<256x8xf32>
    %69 = arith.truncf %68 : vector<256x8xf32> to vector<256x8xbf16>
    %70 = tpu.concatenate %69, %2 in 1 : vector<256x8xbf16>, vector<256x4xbf16> -> vector<256x12xbf16>
    %c0_46 = arith.constant 0 : index
    %c0_47 = arith.constant 0 : index
    %71 = vector.load %arg4[%c0_46, %c0_47] : memref<12x32xbf16, #tpu.memory_space<vmem>>, vector<12x32xbf16>
    %cst_48 = arith.constant dense<0.000000e+00> : vector<256x32xf32>
    %72 = tpu.matmul %70, %71, %cst_48 {dimension_numbers = #tpu.dot_dimension_numbers<[1], [0], [0], [1], [0, 0, 1, 1], [], []>} : vector<256x12xbf16>, vector<12x32xbf16>, vector<256x32xf32> -> vector<256x32xf32>
    %c0_49 = arith.constant 0 : index
    %c0_50 = arith.constant 0 : index
    %73 = vector.load %arg7[%c0_49, %c0_50] : memref<1x32xf32, #tpu.memory_space<vmem>>, vector<1x32xf32>
    %74 = vector.shape_cast %73 : vector<1x32xf32> to vector<32xf32>
    %75 = vector.shape_cast %74 : vector<32xf32> to vector<1x32xf32>
    %76 = vector.broadcast %75 : vector<1x32xf32> to vector<256x32xf32>
    %77 = arith.addf %72, %76 : vector<256x32xf32>
    %cst_51 = arith.constant 0.000000e+00 : f32
    %78 = vector.broadcast %cst_51 : f32 to vector<256x32xf32>
    %79 = arith.maximumf %77, %78 : vector<256x32xf32>
    %c0_52 = arith.constant 0 : index
    %c0_53 = arith.constant 0 : index
    %c0_54 = arith.constant 0 : index
    %80 = vector.load %arg8[%c0_52, %c0_53, %c0_54] : memref<1x256x32xf32, #tpu.memory_space<vmem>>, vector<1x256x32xf32>
    %81 = vector.shape_cast %80 : vector<1x256x32xf32> to vector<256x32xf32>
    %82 = vector.shape_cast %79 : vector<256x32xf32> to vector<1x256x32xf32>
    tpu.vector_store %arg8[%c0_52, %c0_53, %c0_54], %82 {strides = array<i32>} : memref<1x256x32xf32, #tpu.memory_space<vmem>>, vector<1x256x32xf32>,
    return
  }
  func.func @transform_0(%arg0: i32) -> (i32, i32, i32, i32) {
    %c0_i32 = arith.constant 0 : i32
    %c0_i32_0 = arith.constant 0 : i32
    %c0_i32_1 = arith.constant 0 : i32
    %c0_i32_2 = arith.constant 0 : i32
    return %arg0, %c0_i32, %c0_i32_0, %c0_i32_1 : i32, i32, i32, i32
  }
  func.func @transform_1(%arg0: i32) -> (i32, i32) {
    %c0_i32 = arith.constant 0 : i32
    %c0_i32_0 = arith.constant 0 : i32
    %c0_i32_1 = arith.constant 0 : i32
    return %c0_i32, %c0_i32_0 : i32, i32
  }
  func.func @transform_2(%arg0: i32) -> (i32, i32) {
    %c0_i32 = arith.constant 0 : i32
    %c0_i32_0 = arith.constant 0 : i32
    %c0_i32_1 = arith.constant 0 : i32
    return %c0_i32, %c0_i32_0 : i32, i32
  }
  func.func @transform_3(%arg0: i32) -> (i32, i32) {
    %c0_i32 = arith.constant 0 : i32
    %c0_i32_0 = arith.constant 0 : i32
    %c0_i32_1 = arith.constant 0 : i32
    return %c0_i32, %c0_i32_0 : i32, i32
  }
  func.func @transform_4(%arg0: i32) -> (i32, i32) {
    %c0_i32 = arith.constant 0 : i32
    %c0_i32_0 = arith.constant 0 : i32
    %c0_i32_1 = arith.constant 0 : i32
    return %c0_i32, %c0_i32_0 : i32, i32
  }
  func.func @transform_5(%arg0: i32) -> (i32, i32) {
    %c0_i32 = arith.constant 0 : i32
    %c0_i32_0 = arith.constant 0 : i32
    %c0_i32_1 = arith.constant 0 : i32
    return %c0_i32, %c0_i32_0 : i32, i32
  }
  func.func @transform_6(%arg0: i32) -> (i32, i32) {
    %c0_i32 = arith.constant 0 : i32
    %c0_i32_0 = arith.constant 0 : i32
    %c0_i32_1 = arith.constant 0 : i32
    return %c0_i32, %c0_i32_0 : i32, i32
  }
  func.func @transform_7(%arg0: i32) -> (i32, i32, i32) {
    %c0_i32 = arith.constant 0 : i32
    %c0_i32_0 = arith.constant 0 : i32
    %c0_i32_1 = arith.constant 0 : i32
    return %arg0, %c0_i32, %c0_i32_0 : i32, i32, i32
  }
}

</mosaic_0001>

<llo_original>
// kernel: tpu_custom_call.1
$region0: #{tpu_custom_call.1}
  #allocation0 [shape = 'u32[]', space=smem, size = 0x4, offset = 0x4, fixed_abs, tag = 'smem constant byte address 0x4 - core index']
  #allocation1 [shape = 'u32[72,128]{1,0:T(1,128)}', space=vmem, size = 0x9000, scoped, tag = 'internal scratch']
  #allocation2 [shape = 'f32[18,24,8]{2,1,0:T(8,128)}', space=vmem, size = 0x36000, scoped, tag = 'scratch operand']
  #allocation3 [shape = 'bf16[256,72]{1,0:T(8,128)(2,1)}', space=vmem, size = 0x10000, scoped, tag = 'scratch operand']
  %s0 = inlined_call_operand.vmem [shape: bf16[2,16,16,4], index: 0, kind: input, shape index: {}]
  %s1 = inlined_call_operand.vmem [shape: bf16[4,8], index: 1, kind: input, shape index: {}]
  %s2 = inlined_call_operand.vmem [shape: bf16[72,8], index: 2, kind: input, shape index: {}]
  %s3 = inlined_call_operand.vmem [shape: bf16[12,32], index: 3, kind: input, shape index: {}]
  %s4 = inlined_call_operand.vmem [shape: f32[1,8], index: 4, kind: input, shape index: {}]
  %s5 = inlined_call_operand.vmem [shape: f32[1,8], index: 5, kind: input, shape index: {}]
  %s6 = inlined_call_operand.vmem [shape: f32[1,32], index: 6, kind: input, shape index: {}]
  %s7 = inlined_call_operand.vmem [shape: f32[2,256,32], index: 7, kind: output, shape index: {}]
  %s8 = sld [smem:[#allocation0]]
  $region61: #{tpu_custom_call.1} parent=0
    _
  %s10 = ssub.s32 1, %s8
  %s11 = scalar_select 0, %s10, %s8
  loop: start=0, step=1, limit=4
  $region2: #{tpu_custom_call.1} parent=0 // loop_pre_header
    _
  $region3: #{tpu_custom_call.1} parent=0 // loop_header
    %s13 = sphi 0, %s17
    %p14 = scmp.ge.s32.totalorder %s13, 4
    %s23 = sphi 0, %s25
    %s26 = sphi 0, %s23
    %s27 = sphi 0, %s26
    %s43 = sphi 0, %s27
    %s47 = sphi 0, %s47
    %s49 = sphi 0, %s47
    %s50 = sphi 0, %s49
    %s64 = sphi 0, %s50
    %s68 = sphi 0, %s68
    %s70 = sphi 0, %s68
    %s71 = sphi 0, %s70
    %s85 = sphi 0, %s71
    %s89 = sphi 0, %s89
    %s91 = sphi 0, %s89
    %s92 = sphi 0, %s91
    %s106 = sphi 0, %s92
    %s110 = sphi 0, %s110
    %s112 = sphi 0, %s110
    %s113 = sphi 0, %s112
    %s127 = sphi 0, %s113
    %s131 = sphi 0, %s131
    %s133 = sphi 0, %s131
    %s134 = sphi 0, %s133
    %s148 = sphi 0, %s134
    %s152 = sphi 0, %s152
    %s154 = sphi 0, %s152
    %s155 = sphi 0, %s154
    %s169 = sphi 0, %s155
    %s175 = sphi 0, %s177
    %s178 = sphi 0, %s175
    %s179 = sphi 0, %s178
    %s195 = sphi 0, %s179
  $region4: #{tpu_custom_call.1} parent=0 // loop_header_branch
    %16 = sbr.rel (%p14) target = $region8
  $region5: #{tpu_custom_call.1} parent=0 // loop_body
    %s18 = ssub.s32 %s13, 1
    %s19 = ssub.s32 %s13, 2
    %s20 = sadd.s32 %s13, 1
    %s21 = ssub.s32 %s13, %s20
    %p22 = scmp.eq.s32.totalorder %s21, 0
    %s24 = sadd.s32 %s23, 1
    %s25 = scalar_select %p22, %s23, %s24
    %p28 = pneg %p22
    %p29 = scmp.eq.s32.totalorder %s13, 1
    %p30 = por %p28, %p29
    %p31 = scmp.ne.s32.totalorder %s23, %s26
    %p32 = scmp.eq.s32.totalorder %s13, 0
    %p33 = por %p31, %p32
    %p34 = scmp.ne.s32.totalorder %s23, %s26
    %p35 = scmp.eq.s32.totalorder %s18, 1
    %p36 = por %p34, %p35
    %p37 = scmp.ne.s32.totalorder %s26, %s27
    %p38 = scmp.eq.s32.totalorder %s18, 0
    %p39 = por %p37, %p38
    %p40 = scmp.ne.s32.totalorder %s26, %s27
    %p41 = scmp.eq.s32.totalorder %s19, 1
    %p42 = por %p40, %p41
    %p44 = scmp.ne.s32.totalorder %s27, %s43
    %p45 = scmp.eq.s32.totalorder %s19, 0
    %p46 = por %p44, %p45
    %s48 = sadd.s32 %s47, 1
    %p51 = scmp.eq.s32.totalorder %s13, 1
    %p52 = scmp.ne.s32.totalorder %s47, %s49
    %p53 = scmp.eq.s32.totalorder %s13, 0
    %p54 = por %p52, %p53
    %p55 = scmp.ne.s32.totalorder %s47, %s49
    %p56 = scmp.eq.s32.totalorder %s18, 1
    %p57 = por %p55, %p56
    %p58 = scmp.ne.s32.totalorder %s49, %s50
    %p59 = scmp.eq.s32.totalorder %s18, 0
    %p60 = por %p58, %p59
    %p61 = scmp.ne.s32.totalorder %s49, %s50
    %p62 = scmp.eq.s32.totalorder %s19, 1
    %p63 = por %p61, %p62
    %p65 = scmp.ne.s32.totalorder %s50, %s64
    %p66 = scmp.eq.s32.totalorder %s19, 0
    %p67 = por %p65, %p66
    %s69 = sadd.s32 %s68, 1
    %p72 = scmp.eq.s32.totalorder %s13, 1
    %p73 = scmp.ne.s32.totalorder %s68, %s70
    %p74 = scmp.eq.s32.totalorder %s13, 0
    %p75 = por %p73, %p74
    %p76 = scmp.ne.s32.totalorder %s68, %s70
    %p77 = scmp.eq.s32.totalorder %s18, 1
    %p78 = por %p76, %p77
    %p79 = scmp.ne.s32.totalorder %s70, %s71
    %p80 = scmp.eq.s32.totalorder %s18, 0
    %p81 = por %p79, %p80
    %p82 = scmp.ne.s32.totalorder %s70, %s71
    %p83 = scmp.eq.s32.totalorder %s19, 1
    %p84 = por %p82, %p83
    %p86 = scmp.ne.s32.totalorder %s71, %s85
    %p87 = scmp.eq.s32.totalorder %s19, 0
    %p88 = por %p86, %p87
    %s90 = sadd.s32 %s89, 1
    %p93 = scmp.eq.s32.totalorder %s13, 1
    %p94 = scmp.ne.s32.totalorder %s89, %s91
    %p95 = scmp.eq.s32.totalorder %s13, 0
    %p96 = por %p94, %p95
    %p97 = scmp.ne.s32.totalorder %s89, %s91
    %p98 = scmp.eq.s32.totalorder %s18, 1
    %p99 = por %p97, %p98
    %p100 = scmp.ne.s32.totalorder %s91, %s92
    %p101 = scmp.eq.s32.totalorder %s18, 0
    %p102 = por %p100, %p101
    %p103 = scmp.ne.s32.totalorder %s91, %s92
    %p104 = scmp.eq.s32.totalorder %s19, 1
    %p105 = por %p103, %p104
    %p107 = scmp.ne.s32.totalorder %s92, %s106
    %p108 = scmp.eq.s32.totalorder %s19, 0
    %p109 = por %p107, %p108
    %s111 = sadd.s32 %s110, 1
    %p114 = scmp.eq.s32.totalorder %s13, 1
    %p115 = scmp.ne.s32.totalorder %s110, %s112
    %p116 = scmp.eq.s32.totalorder %s13, 0
    %p117 = por %p115, %p116
    %p118 = scmp.ne.s32.totalorder %s110, %s112
    %p119 = scmp.eq.s32.totalorder %s18, 1
    %p120 = por %p118, %p119
    %p121 = scmp.ne.s32.totalorder %s112, %s113
    %p122 = scmp.eq.s32.totalorder %s18, 0
    %p123 = por %p121, %p122
    %p124 = scmp.ne.s32.totalorder %s112, %s113
    %p125 = scmp.eq.s32.totalorder %s19, 1
    %p126 = por %p124, %p125
    %p128 = scmp.ne.s32.totalorder %s113, %s127
    %p129 = scmp.eq.s32.totalorder %s19, 0
    %p130 = por %p128, %p129
    %s132 = sadd.s32 %s131, 1
    %p135 = scmp.eq.s32.totalorder %s13, 1
    %p136 = scmp.ne.s32.totalorder %s131, %s133
    %p137 = scmp.eq.s32.totalorder %s13, 0
    %p138 = por %p136, %p137
    %p139 = scmp.ne.s32.totalorder %s131, %s133
    %p140 = scmp.eq.s32.totalorder %s18, 1
    %p141 = por %p139, %p140
    %p142 = scmp.ne.s32.totalorder %s133, %s134
    %p143 = scmp.eq.s32.totalorder %s18, 0
    %p144 = por %p142, %p143
    %p145 = scmp.ne.s32.totalorder %s133, %s134
    %p146 = scmp.eq.s32.totalorder %s19, 1
    %p147 = por %p145, %p146
    %p149 = scmp.ne.s32.totalorder %s134, %s148
    %p150 = scmp.eq.s32.totalorder %s19, 0
    %p151 = por %p149, %p150
    %s153 = sadd.s32 %s152, 1
    %p156 = scmp.eq.s32.totalorder %s13, 1
    %p157 = scmp.ne.s32.totalorder %s152, %s154
    %p158 = scmp.eq.s32.totalorder %s13, 0
    %p159 = por %p157, %p158
    %p160 = scmp.ne.s32.totalorder %s152, %s154
    %p161 = scmp.eq.s32.totalorder %s18, 1
    %p162 = por %p160, %p161
    %p163 = scmp.ne.s32.totalorder %s154, %s155
    %p164 = scmp.eq.s32.totalorder %s18, 0
    %p165 = por %p163, %p164
    %p166 = scmp.ne.s32.totalorder %s154, %s155
    %p167 = scmp.eq.s32.totalorder %s19, 1
    %p168 = por %p166, %p167
    %p170 = scmp.ne.s32.totalorder %s155, %s169
    %p171 = scmp.eq.s32.totalorder %s19, 0
    %p172 = por %p170, %p171
    %s173 = ssub.s32 %s13, %s20
    %p174 = scmp.eq.s32.totalorder %s173, 0
    %s176 = sadd.s32 %s175, 1
    %s177 = scalar_select %p174, %s175, %s176
    %p180 = pneg %p174
    %p181 = scmp.eq.s32.totalorder %s13, 1
    %p182 = por %p180, %p181
    %p183 = scmp.ne.s32.totalorder %s175, %s178
    %p184 = scmp.eq.s32.totalorder %s13, 0
    %p185 = por %p183, %p184
    %p186 = scmp.ne.s32.totalorder %s175, %s178
    %p187 = scmp.eq.s32.totalorder %s18, 1
    %p188 = por %p186, %p187
    %p189 = scmp.ne.s32.totalorder %s178, %s179
    %p190 = scmp.eq.s32.totalorder %s18, 0
    %p191 = por %p189, %p190
    %p192 = scmp.ne.s32.totalorder %s178, %s179
    %p193 = scmp.eq.s32.totalorder %s19, 1
    %p194 = por %p192, %p193
    %p196 = scmp.ne.s32.totalorder %s179, %s195
    %p197 = scmp.eq.s32.totalorder %s19, 0
    %p198 = por %p196, %p197
    %p199 = scmp.le.s32.totalorder 1, %s13
    %p200 = scmp.lt.s32.totalorder %s13, 3
    %p201 = pnand %p199, %p200
    %p202 = pneg %p201
    // Predicated region
    $region9: #{tpu_custom_call.1} parent=5 // pred_check
      _
    $region10: #{tpu_custom_call.1} parent=5 // pred_check_branch
      %204 = sbr.rel (%p201) target = $region12
    $region11: #{tpu_custom_call.1} parent=5 // pred_region
      %s205 = ssub.s32 %s13, 1
      // Predicated region
      $region13: #{tpu_custom_call.1} parent=11 // pred_check
        %p206 = pneg %p60
      $region14: #{tpu_custom_call.1} parent=11 // pred_check_branch
        %208 = sbr.rel (%p206) target = $region16
      $region15: #{tpu_custom_call.1} parent=11 // pred_region
        _
      $region16: #{tpu_custom_call.1} parent=11 // pred_fallthru
        _
      // Predicated region
      $region17: #{tpu_custom_call.1} parent=11 // pred_check
        %p209 = pneg %p81
      $region18: #{tpu_custom_call.1} parent=11 // pred_check_branch
        %211 = sbr.rel (%p209) target = $region20
      $region19: #{tpu_custom_call.1} parent=11 // pred_region
        _
      $region20: #{tpu_custom_call.1} parent=11 // pred_fallthru
        _
      // Predicated region
      $region21: #{tpu_custom_call.1} parent=11 // pred_check
        %p212 = pneg %p102
      $region22: #{tpu_custom_call.1} parent=11 // pred_check_branch
        %214 = sbr.rel (%p212) target = $region24
      $region23: #{tpu_custom_call.1} parent=11 // pred_region
        _
      $region24: #{tpu_custom_call.1} parent=11 // pred_fallthru
        _
      // Predicated region
      $region25: #{tpu_custom_call.1} parent=11 // pred_check
        %p215 = pneg %p123
      $region26: #{tpu_custom_call.1} parent=11 // pred_check_branch
        %217 = sbr.rel (%p215) target = $region28
      $region27: #{tpu_custom_call.1} parent=11 // pred_region
        _
      $region28: #{tpu_custom_call.1} parent=11 // pred_fallthru
        _
      // Predicated region
      $region29: #{tpu_custom_call.1} parent=11 // pred_check
        %p218 = pneg %p144
      $region30: #{tpu_custom_call.1} parent=11 // pred_check_branch
        %220 = sbr.rel (%p218) target = $region32
      $region31: #{tpu_custom_call.1} parent=11 // pred_region
        _
      $region32: #{tpu_custom_call.1} parent=11 // pred_fallthru
        _
      // Predicated region
      $region33: #{tpu_custom_call.1} parent=11 // pred_check
        %p221 = pneg %p165
      $region34: #{tpu_custom_call.1} parent=11 // pred_check_branch
        %223 = sbr.rel (%p221) target = $region36
      $region35: #{tpu_custom_call.1} parent=11 // pred_region
        _
      $region36: #{tpu_custom_call.1} parent=11 // pred_fallthru
        _
    $region12: #{tpu_custom_call.1} parent=5 // pred_fallthru
      _
    %p224 = scmp.lt.s32.totalorder %s13, 2
    // Predicated region
    $region37: #{tpu_custom_call.1} parent=5 // pred_check
      %p225 = pneg %p224
    $region38: #{tpu_custom_call.1} parent=5 // pred_check_branch
      %227 = sbr.rel (%p225) target = $region40
    $region39: #{tpu_custom_call.1} parent=5 // pred_region
      // Predicated region
      $region41: #{tpu_custom_call.1} parent=39 // pred_check
        %p228 = pneg %p33
      $region42: #{tpu_custom_call.1} parent=39 // pred_check_branch
        %230 = sbr.rel (%p228) target = $region44
      $region43: #{tpu_custom_call.1} parent=39 // pred_region
        %p231 = scmp.lt.s32.totalorder %s13, 1
        %s232 = scalar_select %p231, %s13, 1
        %s233 = smul.addr %s232, 32
        %s234 = smul.addr %s233, 4
        %s235 = scalar_lea.vmem %s0, %s234
      $region44: #{tpu_custom_call.1} parent=39 // pred_fallthru
        _
    $region40: #{tpu_custom_call.1} parent=5 // pred_fallthru
      _
    %p236 = scmp.le.s32.totalorder 1, %s13
    %p237 = scmp.lt.s32.totalorder %s13, 3
    %p238 = pnand %p236, %p237
    %p239 = pneg %p238
    // Predicated region
    $region45: #{tpu_custom_call.1} parent=5 // pred_check
      _
    $region46: #{tpu_custom_call.1} parent=5 // pred_check_branch
      %241 = sbr.rel (%p238) target = $region48
    $region47: #{tpu_custom_call.1} parent=5 // pred_region
      %s242 = ssub.s32 %s13, 1
      %p243 = scmp.lt.s32.totalorder %s18, 1
      %s244 = scalar_select %p243, %s18, 1
      %s245 = smul.addr %s244, 32
      %s246 = smul.addr %s245, 4
      %s247 = scalar_lea.vmem %s0, %s246
      %p248 = pneg %p39
      %p249 = pneg %p36
      %p250 = pneg %p60
      %p251 = pneg %p57
      %p252 = pneg %p81
      %p253 = pneg %p78
      %p254 = pneg %p102
      %p255 = pneg %p99
      %p256 = pneg %p123
      %p257 = pneg %p120
      %p258 = pneg %p144
      %p259 = pneg %p141
      %p260 = pneg %p165
      %p261 = pneg %p162
      %p262 = pneg %p191
      %p263 = pneg %p188
      %p264 = scmp.lt.s32.totalorder %s18, 1
      %s265 = scalar_select %p264, %s18, 1
      %s266 = smul.addr %s265, 32
      %s267 = smul.addr %s266, 8
      %s268 = scalar_lea.vmem %s7, %s267
      %p269 = scmp.lt.s32.totalorder %s18, 1
      %s270 = scalar_select %p269, %s18, 1
      %s271 = smul.addr %s270, 32
      %s272 = smul.addr %s271, 4
      %s273 = scalar_lea.vmem %s0, %s272
      %p274 = scmp.lt.s32.totalorder %s18, 1
      %s275 = scalar_select %p274, %s18, 1
      %s276 = smul.addr %s275, 32
      %s277 = smul.addr %s276, 8
      %s278 = scalar_lea.vmem %s7, %s277
      %v280 = vld [vmem:[%s273] sm:$0xf]
      %v281 = vld [vmem:[%s273 + $0x4] sm:$0xf]
      %v282 = vld [vmem:[%s273 + $0x8] sm:$0xf]
      %v283 = vld [vmem:[%s273 + $0xc] sm:$0xf]
      %v284 = vld [vmem:[%s273 + $0x10] sm:$0xf]
      %v285 = vld [vmem:[%s273 + $0x14] sm:$0xf]
      %v286 = vld [vmem:[%s273 + $0x18] sm:$0xf]
      %v287 = vld [vmem:[%s273 + $0x1c] sm:$0xf]
      %v288 = vld [vmem:[%s273 + $0x20] sm:$0xf]
      %v289 = vld [vmem:[%s273 + $0x24] sm:$0xf]
      %v290 = vld [vmem:[%s273 + $0x28] sm:$0xf]
      %v291 = vld [vmem:[%s273 + $0x2c] sm:$0xf]
      %v292 = vld [vmem:[%s273 + $0x30] sm:$0xf]
      %v293 = vld [vmem:[%s273 + $0x34] sm:$0xf]
      %v294 = vld [vmem:[%s273 + $0x38] sm:$0xf]
      %v295 = vld [vmem:[%s273 + $0x3c] sm:$0xf]
      %v296 = vld [vmem:[%s273 + $0x40] sm:$0xf]
      %v297 = vld [vmem:[%s273 + $0x44] sm:$0xf]
      %v298 = vld [vmem:[%s273 + $0x48] sm:$0xf]
      %v299 = vld [vmem:[%s273 + $0x4c] sm:$0xf]
      %v300 = vld [vmem:[%s273 + $0x50] sm:$0xf]
      %v301 = vld [vmem:[%s273 + $0x54] sm:$0xf]
      %v302 = vld [vmem:[%s273 + $0x58] sm:$0xf]
      %v303 = vld [vmem:[%s273 + $0x5c] sm:$0xf]
      %v304 = vld [vmem:[%s273 + $0x60] sm:$0xf]
      %v305 = vld [vmem:[%s273 + $0x64] sm:$0xf]
      %v306 = vld [vmem:[%s273 + $0x68] sm:$0xf]
      %v307 = vld [vmem:[%s273 + $0x6c] sm:$0xf]
      %v308 = vld [vmem:[%s273 + $0x70] sm:$0xf]
      %v309 = vld [vmem:[%s273 + $0x74] sm:$0xf]
      %v310 = vld [vmem:[%s273 + $0x78] sm:$0xf]
      %v311 = vld [vmem:[%s273 + $0x7c] sm:$0xf]
      %v312 = vld [vmem:[%s1] sm:$0x3]
      %v313 = vld [vmem:[%s4] sm:$0x1]
      %v315 = vperm.slane %v313, 0
      %v349 = vunpack.c.l.b16 %v280
      %v350 = vunpack.c.l.b16 %v281
      %v351 = vunpack.c.l.b16 %v282
      %v352 = vunpack.c.l.b16 %v283
      %v353 = vunpack.c.l.b16 %v284
      %v354 = vunpack.c.l.b16 %v285
      %v355 = vunpack.c.l.b16 %v286
      %v356 = vunpack.c.l.b16 %v287
      %v357 = vunpack.c.l.b16 %v288
      %v358 = vunpack.c.l.b16 %v289
      %v359 = vunpack.c.l.b16 %v290
      %v360 = vunpack.c.l.b16 %v291
      %v361 = vunpack.c.l.b16 %v292
      %v362 = vunpack.c.l.b16 %v293
      %v363 = vunpack.c.l.b16 %v294
      %v364 = vunpack.c.l.b16 %v295
      %v365 = vunpack.c.l.b16 %v296
      %v366 = vunpack.c.l.b16 %v297
      %v367 = vunpack.c.l.b16 %v298
      %v368 = vunpack.c.l.b16 %v299
      %v369 = vunpack.c.l.b16 %v300
      %v370 = vunpack.c.l.b16 %v301
      %v371 = vunpack.c.l.b16 %v302
      %v372 = vunpack.c.l.b16 %v303
      %v373 = vunpack.c.l.b16 %v304
      %v374 = vunpack.c.l.b16 %v305
      %v375 = vunpack.c.l.b16 %v306
      %v376 = vunpack.c.l.b16 %v307
      %v377 = vunpack.c.l.b16 %v308
      %v378 = vunpack.c.l.b16 %v309
      %v379 = vunpack.c.l.b16 %v310
      %v380 = vunpack.c.l.b16 %v311
      %v381 = vpack.c.b16 %v350, %v349
      %v382 = vpack.c.b16 %v352, %v351
      %v383 = vpack.c.b16 %v354, %v353
      %v384 = vpack.c.b16 %v356, %v355
      %v385 = vpack.c.b16 %v358, %v357
      %v386 = vpack.c.b16 %v360, %v359
      %v387 = vpack.c.b16 %v362, %v361
      %v388 = vpack.c.b16 %v364, %v363
      %v389 = vpack.c.b16 %v366, %v365
      %v390 = vpack.c.b16 %v368, %v367
      %v391 = vpack.c.b16 %v370, %v369
      %v392 = vpack.c.b16 %v372, %v371
      %v393 = vpack.c.b16 %v374, %v373
      %v394 = vpack.c.b16 %v376, %v375
      %v395 = vpack.c.b16 %v378, %v377
      %v396 = vpack.c.b16 %v380, %v379
      %vm397 = vcmask 31744
      %v399 = vsel %vm397, %v381, 0
      %v402 = vsel %vm397, %v382, 0
      %v405 = vsel %vm397, %v383, 0
      %v408 = vsel %vm397, %v384, 0
      %v411 = vsel %vm397, %v385, 0
      %v414 = vsel %vm397, %v386, 0
      %v417 = vsel %vm397, %v387, 0
      %v420 = vsel %vm397, %v388, 0
      %v423 = vsel %vm397, %v389, 0
      %v426 = vsel %vm397, %v390, 0
      %v429 = vsel %vm397, %v391, 0
      %v432 = vsel %vm397, %v392, 0
      %v435 = vsel %vm397, %v393, 0
      %v438 = vsel %vm397, %v394, 0
      %v441 = vsel %vm397, %v395, 0
      %v444 = vsel %vm397, %v396, 0
      %vm446 = vcmask 1041408
      %v448 = vsel %vm446, %v312, 0
      %450 = vmatpush.bf16.msra.mxu0 0
      %451 = vmatpush.bf16.msra.mxu0 0
      %452 = vmatpush.bf16.msra.mxu0 0
      %453 = vmatpush.bf16.msra.mxu0 0
      %454 = vmatpush.bf16.msra.mxu0 0
      %455 = vmatpush.bf16.msra.mxu0 0
      %456 = vmatpush.bf16.msra.mxu0 0
      %457 = vmatpush.bf16.msra.mxu0 %v448
      %458 = vmatmul.bf16.gmra.mxu0 %v399
      %v459 = vpop.f32.mrf.mxu0
      %v460 = vadd.f32 %v315, %v459
      %v461 = vpop.f32.mrf.mxu0
      %v462 = vadd.f32 %v315, %v461
      %463 = vmatmul.bf16.gmra.mxu0 %v402
      %v464 = vpop.f32.mrf.mxu0
      %v465 = vadd.f32 %v315, %v464
      %v466 = vpop.f32.mrf.mxu0
      %v467 = vadd.f32 %v315, %v466
      %468 = vmatmul.bf16.gmra.mxu0 %v405
      %v469 = vpop.f32.mrf.mxu0
      %v470 = vadd.f32 %v315, %v469
      %v471 = vpop.f32.mrf.mxu0
      %v472 = vadd.f32 %v315, %v471
      %473 = vmatmul.bf16.gmra.mxu0 %v408
      %v474 = vpop.f32.mrf.mxu0
      %v475 = vadd.f32 %v315, %v474
      %v476 = vpop.f32.mrf.mxu0
      %v477 = vadd.f32 %v315, %v476
      %478 = vmatmul.bf16.gmra.mxu0 %v411
      %v479 = vpop.f32.mrf.mxu0
      %v480 = vadd.f32 %v315, %v479
      %v481 = vpop.f32.mrf.mxu0
      %v482 = vadd.f32 %v315, %v481
      %483 = vmatmul.bf16.gmra.mxu0 %v414
      %v484 = vpop.f32.mrf.mxu0
      %v485 = vadd.f32 %v315, %v484
      %v486 = vpop.f32.mrf.mxu0
      %v487 = vadd.f32 %v315, %v486
      %488 = vmatmul.bf16.gmra.mxu0 %v417
      %v489 = vpop.f32.mrf.mxu0
      %v490 = vadd.f32 %v315, %v489
      %v491 = vpop.f32.mrf.mxu0
      %v492 = vadd.f32 %v315, %v491
      %493 = vmatmul.bf16.gmra.mxu0 %v420
      %v494 = vpop.f32.mrf.mxu0
      %v495 = vadd.f32 %v315, %v494
      %v496 = vpop.f32.mrf.mxu0
      %v497 = vadd.f32 %v315, %v496
      %498 = vmatmul.bf16.gmra.mxu0 %v423
      %v499 = vpop.f32.mrf.mxu0
      %v500 = vadd.f32 %v315, %v499
      %v501 = vpop.f32.mrf.mxu0
      %v502 = vadd.f32 %v315, %v501
      %503 = vmatmul.bf16.gmra.mxu0 %v426
      %v504 = vpop.f32.mrf.mxu0
      %v505 = vadd.f32 %v315, %v504
      %v506 = vpop.f32.mrf.mxu0
      %v507 = vadd.f32 %v315, %v506
      %508 = vmatmul.bf16.gmra.mxu0 %v429
      %v509 = vpop.f32.mrf.mxu0
      %v510 = vadd.f32 %v315, %v509
      %v511 = vpop.f32.mrf.mxu0
      %v512 = vadd.f32 %v315, %v511
      %513 = vmatmul.bf16.gmra.mxu0 %v432
      %v514 = vpop.f32.mrf.mxu0
      %v515 = vadd.f32 %v315, %v514
      %v516 = vpop.f32.mrf.mxu0
      %v517 = vadd.f32 %v315, %v516
      %518 = vmatmul.bf16.gmra.mxu0 %v435
      %v519 = vpop.f32.mrf.mxu0
      %v520 = vadd.f32 %v315, %v519
      %v521 = vpop.f32.mrf.mxu0
      %v522 = vadd.f32 %v315, %v521
      %523 = vmatmul.bf16.gmra.mxu0 %v438
      %v524 = vpop.f32.mrf.mxu0
      %v525 = vadd.f32 %v315, %v524
      %v526 = vpop.f32.mrf.mxu0
      %v527 = vadd.f32 %v315, %v526
      %528 = vmatmul.bf16.gmra.mxu0 %v441
      %v529 = vpop.f32.mrf.mxu0
      %v530 = vadd.f32 %v315, %v529
      %v531 = vpop.f32.mrf.mxu0
      %v532 = vadd.f32 %v315, %v531
      %533 = vmatmul.bf16.gmra.mxu0 %v444
      %v534 = vpop.f32.mrf.mxu0
      %v535 = vadd.f32 %v315, %v534
      %v536 = vpop.f32.mrf.mxu0
      %v537 = vadd.f32 %v315, %v536
      %538 = vdwg.mxu0
      %v539 = vmax.f32 %v460, 0.0
      %v540 = vmax.f32 %v462, 0.0
      %v541 = vmax.f32 %v465, 0.0
      %v542 = vmax.f32 %v467, 0.0
      %v543 = vmax.f32 %v470, 0.0
      %v544 = vmax.f32 %v472, 0.0
      %v545 = vmax.f32 %v475, 0.0
      %v546 = vmax.f32 %v477, 0.0
      %v547 = vmax.f32 %v480, 0.0
      %v548 = vmax.f32 %v482, 0.0
      %v549 = vmax.f32 %v485, 0.0
      %v550 = vmax.f32 %v487, 0.0
      %v551 = vmax.f32 %v490, 0.0
      %v552 = vmax.f32 %v492, 0.0
      %v553 = vmax.f32 %v495, 0.0
      %v554 = vmax.f32 %v497, 0.0
      %v555 = vmax.f32 %v500, 0.0
      %v556 = vmax.f32 %v502, 0.0
      %v557 = vmax.f32 %v505, 0.0
      %v558 = vmax.f32 %v507, 0.0
      %v559 = vmax.f32 %v510, 0.0
      %v560 = vmax.f32 %v512, 0.0
      %v561 = vmax.f32 %v515, 0.0
      %v562 = vmax.f32 %v517, 0.0
      %v563 = vmax.f32 %v520, 0.0
      %v564 = vmax.f32 %v522, 0.0
      %v565 = vmax.f32 %v525, 0.0
      %v566 = vmax.f32 %v527, 0.0
      %v567 = vmax.f32 %v530, 0.0
      %v568 = vmax.f32 %v532, 0.0
      %v569 = vmax.f32 %v535, 0.0
      %v570 = vmax.f32 %v537, 0.0
      %vm571 = vcmask 64512
      %572 = vst.msk [vmem:[#allocation2] sm:$0xff] %vm571, 0.0
      %573 = vst.msk [vmem:[#allocation2 + $0x8] sm:$0xff] %vm571, 0.0
      %574 = vst.msk [vmem:[#allocation2 + $0x10] sm:$0xff] %vm571, 0.0
      %s575 = scalar_lea.vmem [#allocation2], 408
      %576 = vst.msk [vmem:[%s575] sm:$0xff] %vm571, 0.0
      %577 = vst.msk [vmem:[%s575 + $0x8] sm:$0xff] %vm571, 0.0
      %578 = vst.msk [vmem:[%s575 + $0x10] sm:$0xff] %vm571, 0.0
      %vm579 = vcmask 57344
      %580 = vst.msk [vmem:[#allocation2] sm:$0x1] %vm579, 0.0
      %581 = vst.msk [vmem:[#allocation2 + $0x18] sm:$0x1] %vm579, 0.0
      %582 = vst.msk [vmem:[#allocation2 + $0x30] sm:$0x1] %vm579, 0.0
      %583 = vst.msk [vmem:[#allocation2 + $0x48] sm:$0x1] %vm579, 0.0
      %584 = vst.msk [vmem:[#allocation2 + $0x60] sm:$0x1] %vm579, 0.0
      %585 = vst.msk [vmem:[#allocation2 + $0x78] sm:$0x1] %vm579, 0.0
      %586 = vst.msk [vmem:[#allocation2 + $0x90] sm:$0x1] %vm579, 0.0
      %587 = vst.msk [vmem:[#allocation2 + $0xa8] sm:$0x1] %vm579, 0.0
      %588 = vst.msk [vmem:[#allocation2 + $0xc0] sm:$0x1] %vm579, 0.0
      %589 = vst.msk [vmem:[#allocation2 + $0xd8] sm:$0x1] %vm579, 0.0
      %590 = vst.msk [vmem:[#allocation2 + $0xf0] sm:$0x1] %vm579, 0.0
      %591 = vst.msk [vmem:[#allocation2 + $0x108] sm:$0x1] %vm579, 0.0
      %592 = vst.msk [vmem:[#allocation2 + $0x120] sm:$0x1] %vm579, 0.0
      %593 = vst.msk [vmem:[#allocation2 + $0x138] sm:$0x1] %vm579, 0.0
      %594 = vst.msk [vmem:[#allocation2 + $0x150] sm:$0x1] %vm579, 0.0
      %595 = vst.msk [vmem:[#allocation2 + $0x168] sm:$0x1] %vm579, 0.0
      %596 = vst.msk [vmem:[#allocation2 + $0x180] sm:$0x1] %vm579, 0.0
      %597 = vst.msk [vmem:[#allocation2 + $0x198] sm:$0x1] %vm579, 0.0
      %vm598 = vcmask 63488
      %599 = vst.msk [vmem:[#allocation2 + $0x11] sm:$0x7f] %vm598, 0.0
      %600 = vst.msk [vmem:[#allocation2 + $0x29] sm:$0x7f] %vm598, 0.0
      %601 = vst.msk [vmem:[#allocation2 + $0x41] sm:$0x7f] %vm598, 0.0
      %602 = vst.msk [vmem:[#allocation2 + $0x59] sm:$0x7f] %vm598, 0.0
      %603 = vst.msk [vmem:[#allocation2 + $0x71] sm:$0x7f] %vm598, 0.0
      %604 = vst.msk [vmem:[#allocation2 + $0x89] sm:$0x7f] %vm598, 0.0
      %605 = vst.msk [vmem:[#allocation2 + $0xa1] sm:$0x7f] %vm598, 0.0
      %606 = vst.msk [vmem:[#allocation2 + $0xb9] sm:$0x7f] %vm598, 0.0
      %607 = vst.msk [vmem:[#allocation2 + $0xd1] sm:$0x7f] %vm598, 0.0
      %608 = vst.msk [vmem:[#allocation2 + $0xe9] sm:$0x7f] %vm598, 0.0
      %609 = vst.msk [vmem:[#allocation2 + $0x101] sm:$0x7f] %vm598, 0.0
      %610 = vst.msk [vmem:[#allocation2 + $0x119] sm:$0x7f] %vm598, 0.0
      %611 = vst.msk [vmem:[#allocation2 + $0x131] sm:$0x7f] %vm598, 0.0
      %612 = vst.msk [vmem:[#allocation2 + $0x149] sm:$0x7f] %vm598, 0.0
      %613 = vst.msk [vmem:[#allocation2 + $0x161] sm:$0x7f] %vm598, 0.0
      %614 = vst.msk [vmem:[#allocation2 + $0x179] sm:$0x7f] %vm598, 0.0
      %615 = vst.msk [vmem:[#allocation2 + $0x191] sm:$0x7f] %vm598, 0.0
      %616 = vst.msk [vmem:[#allocation2 + $0x1a9] sm:$0x7f] %vm598, 0.0
      %s617 = scalar_lea.vmem [#allocation2], 24
      %618 = vst.msk [vmem:[%s617 + $0x1] sm:$0xff] %vm571, %v539
      %619 = vst.msk [vmem:[%s617 + $0x9] sm:$0xff] %vm571, %v540
      %620 = vst.msk [vmem:[%s617 + $0x19] sm:$0xff] %vm571, %v541
      %621 = vst.msk [vmem:[%s617 + $0x21] sm:$0xff] %vm571, %v542
      %622 = vst.msk [vmem:[%s617 + $0x31] sm:$0xff] %vm571, %v543
      %623 = vst.msk [vmem:[%s617 + $0x39] sm:$0xff] %vm571, %v544
      %624 = vst.msk [vmem:[%s617 + $0x49] sm:$0xff] %vm571, %v545
      %625 = vst.msk [vmem:[%s617 + $0x51] sm:$0xff] %vm571, %v546
      %626 = vst.msk [vmem:[%s617 + $0x61] sm:$0xff] %vm571, %v547
      %627 = vst.msk [vmem:[%s617 + $0x69] sm:$0xff] %vm571, %v548
      %628 = vst.msk [vmem:[%s617 + $0x79] sm:$0xff] %vm571, %v549
      %629 = vst.msk [vmem:[%s617 + $0x81] sm:$0xff] %vm571, %v550
      %630 = vst.msk [vmem:[%s617 + $0x91] sm:$0xff] %vm571, %v551
      %631 = vst.msk [vmem:[%s617 + $0x99] sm:$0xff] %vm571, %v552
      %632 = vst.msk [vmem:[%s617 + $0xa9] sm:$0xff] %vm571, %v553
      %633 = vst.msk [vmem:[%s617 + $0xb1] sm:$0xff] %vm571, %v554
      %634 = vst.msk [vmem:[%s617 + $0xc1] sm:$0xff] %vm571, %v555
      %635 = vst.msk [vmem:[%s617 + $0xc9] sm:$0xff] %vm571, %v556
      %636 = vst.msk [vmem:[%s617 + $0xd9] sm:$0xff] %vm571, %v557
      %637 = vst.msk [vmem:[%s617 + $0xe1] sm:$0xff] %vm571, %v558
      %638 = vst.msk [vmem:[%s617 + $0xf1] sm:$0xff] %vm571, %v559
      %639 = vst.msk [vmem:[%s617 + $0xf9] sm:$0xff] %vm571, %v560
      %640 = vst.msk [vmem:[%s617 + $0x109] sm:$0xff] %vm571, %v561
      %641 = vst.msk [vmem:[%s617 + $0x111] sm:$0xff] %vm571, %v562
      %642 = vst.msk [vmem:[%s617 + $0x121] sm:$0xff] %vm571, %v563
      %643 = vst.msk [vmem:[%s617 + $0x129] sm:$0xff] %vm571, %v564
      %644 = vst.msk [vmem:[%s617 + $0x139] sm:$0xff] %vm571, %v565
      %645 = vst.msk [vmem:[%s617 + $0x141] sm:$0xff] %vm571, %v566
      %646 = vst.msk [vmem:[%s617 + $0x151] sm:$0xff] %vm571, %v567
      %647 = vst.msk [vmem:[%s617 + $0x159] sm:$0xff] %vm571, %v568
      %648 = vst.msk [vmem:[%s617 + $0x169] sm:$0xff] %vm571, %v569
      %649 = vst.msk [vmem:[%s617 + $0x171] sm:$0xff] %vm571, %v570
      %v650 = vld [vmem:[#allocation2] sm:$0xff]
      %v651 = vld [vmem:[#allocation2 + $0x8] sm:$0xff]
      %v652 = vld [vmem:[#allocation2 + $0x10] sm:$0xff]
      %v653 = vld [vmem:[#allocation2 + $0x18] sm:$0xff]
      %v654 = vld [vmem:[#allocation2 + $0x20] sm:$0xff]
      %v655 = vld [vmem:[#allocation2 + $0x28] sm:$0xff]
      %v656 = vld [vmem:[#allocation2 + $0x30] sm:$0xff]
      %v657 = vld [vmem:[#allocation2 + $0x38] sm:$0xff]
      %v658 = vld [vmem:[#allocation2 + $0x40] sm:$0xff]
      %v659 = vld [vmem:[#allocation2 + $0x48] sm:$0xff]
      %v660 = vld [vmem:[#allocation2 + $0x50] sm:$0xff]
      %v661 = vld [vmem:[#allocation2 + $0x58] sm:$0xff]
      %v662 = vld [vmem:[#allocation2 + $0x60] sm:$0xff]
      %v663 = vld [vmem:[#allocation2 + $0x68] sm:$0xff]
      %v664 = vld [vmem:[#allocation2 + $0x70] sm:$0xff]
      %v665 = vld [vmem:[#allocation2 + $0x78] sm:$0xff]
      %v666 = vld [vmem:[#allocation2 + $0x80] sm:$0xff]
      %v667 = vld [vmem:[#allocation2 + $0x88] sm:$0xff]
      %v668 = vld [vmem:[#allocation2 + $0x90] sm:$0xff]
      %v669 = vld [vmem:[#allocation2 + $0x98] sm:$0xff]
      %v670 = vld [vmem:[#allocation2 + $0xa0] sm:$0xff]
      %v671 = vld [vmem:[#allocation2 + $0xa8] sm:$0xff]
      %v672 = vld [vmem:[#allocation2 + $0xb0] sm:$0xff]
      %v673 = vld [vmem:[#allocation2 + $0xb8] sm:$0xff]
      %v674 = vld [vmem:[#allocation2 + $0xc0] sm:$0xff]
      %v675 = vld [vmem:[#allocation2 + $0xc8] sm:$0xff]
      %v676 = vld [vmem:[#allocation2 + $0xd0] sm:$0xff]
      %v677 = vld [vmem:[#allocation2 + $0xd8] sm:$0xff]
      %v678 = vld [vmem:[#allocation2 + $0xe0] sm:$0xff]
      %v679 = vld [vmem:[#allocation2 + $0xe8] sm:$0xff]
      %v680 = vld [vmem:[#allocation2 + $0xf0] sm:$0xff]
      %v681 = vld [vmem:[#allocation2 + $0xf8] sm:$0xff]
      %v682 = vld [vmem:[#allocation2 + $0x100] sm:$0xff]
      %v683 = vld [vmem:[#allocation2 + $0x108] sm:$0xff]
      %v684 = vld [vmem:[#allocation2 + $0x110] sm:$0xff]
      %v685 = vld [vmem:[#allocation2 + $0x118] sm:$0xff]
      %v686 = vld [vmem:[#allocation2 + $0x120] sm:$0xff]
      %v687 = vld [vmem:[#allocation2 + $0x128] sm:$0xff]
      %v688 = vld [vmem:[#allocation2 + $0x130] sm:$0xff]
      %v689 = vld [vmem:[#allocation2 + $0x138] sm:$0xff]
      %v690 = vld [vmem:[#allocation2 + $0x140] sm:$0xff]
      %v691 = vld [vmem:[#allocation2 + $0x148] sm:$0xff]
      %v692 = vld [vmem:[#allocation2 + $0x150] sm:$0xff]
      %v693 = vld [vmem:[#allocation2 + $0x158] sm:$0xff]
      %v694 = vld [vmem:[#allocation2 + $0x160] sm:$0xff]
      %v695 = vld [vmem:[#allocation2 + $0x168] sm:$0xff]
      %v696 = vld [vmem:[#allocation2 + $0x170] sm:$0xff]
      %v697 = vld [vmem:[#allocation2 + $0x178] sm:$0xff]
      %v698 = vld [vmem:[#allocation2 + $0x180] sm:$0xff]
      %v699 = vld [vmem:[#allocation2 + $0x188] sm:$0xff]
      %v700 = vld [vmem:[#allocation2 + $0x190] sm:$0xff]
      %v701 = vld [vmem:[#allocation2 + $0x198] sm:$0xff]
      %v702 = vld [vmem:[#allocation2 + $0x1a0] sm:$0xff]
      %v703 = vld [vmem:[#allocation2 + $0x1a8] sm:$0xff]
      %v704 = vpack.c.bf16 %v650, %v650
      %v705 = vpack.c.bf16 %v651, %v651
      %v706 = vpack.c.bf16 %v653, %v653
      %v707 = vpack.c.bf16 %v654, %v654
      %v708 = vpack.c.bf16 %v656, %v656
      %v709 = vpack.c.bf16 %v657, %v657
      %v710 = vpack.c.bf16 %v659, %v659
      %v711 = vpack.c.bf16 %v660, %v660
      %v712 = vpack.c.bf16 %v662, %v662
      %v713 = vpack.c.bf16 %v663, %v663
      %v714 = vpack.c.bf16 %v665, %v665
      %v715 = vpack.c.bf16 %v666, %v666
      %v716 = vpack.c.bf16 %v668, %v668
      %v717 = vpack.c.bf16 %v669, %v669
      %v718 = vpack.c.bf16 %v671, %v671
      %v719 = vpack.c.bf16 %v672, %v672
      %v720 = vpack.c.bf16 %v674, %v674
      %v721 = vpack.c.bf16 %v675, %v675
      %v722 = vpack.c.bf16 %v677, %v677
      %v723 = vpack.c.bf16 %v678, %v678
      %v724 = vpack.c.bf16 %v680, %v680
      %v725 = vpack.c.bf16 %v681, %v681
      %v726 = vpack.c.bf16 %v683, %v683
      %v727 = vpack.c.bf16 %v684, %v684
      %v728 = vpack.c.bf16 %v686, %v686
      %v729 = vpack.c.bf16 %v687, %v687
      %v730 = vpack.c.bf16 %v689, %v689
      %v731 = vpack.c.bf16 %v690, %v690
      %v732 = vpack.c.bf16 %v692, %v692
      %v733 = vpack.c.bf16 %v693, %v693
      %v734 = vpack.c.bf16 %v695, %v695
      %v735 = vpack.c.bf16 %v696, %v696
      %vm736 = vcmask 60416
      %737 = vst.msk [vmem:[#allocation3] sm:$0xf] %vm736, %v704
      %738 = vst.msk [vmem:[#allocation3 + $0x4] sm:$0xf] %vm736, %v705
      %739 = vst.msk [vmem:[#allocation3 + $0x8] sm:$0xf] %vm736, %v706
      %740 = vst.msk [vmem:[#allocation3 + $0xc] sm:$0xf] %vm736, %v707
      %741 = vst.msk [vmem:[#allocation3 + $0x10] sm:$0xf] %vm736, %v708
      %742 = vst.msk [vmem:[#allocation3 + $0x14] sm:$0xf] %vm736, %v709
      %743 = vst.msk [vmem:[#allocation3 + $0x18] sm:$0xf] %vm736, %v710
      %744 = vst.msk [vmem:[#allocation3 + $0x1c] sm:$0xf] %vm736, %v711
      %745 = vst.msk [vmem:[#allocation3 + $0x20] sm:$0xf] %vm736, %v712
      %746 = vst.msk [vmem:[#allocation3 + $0x24] sm:$0xf] %vm736, %v713
      %747 = vst.msk [vmem:[#allocation3 + $0x28] sm:$0xf] %vm736, %v714
      %748 = vst.msk [vmem:[#allocation3 + $0x2c] sm:$0xf] %vm736, %v715
      %749 = vst.msk [vmem:[#allocation3 + $0x30] sm:$0xf] %vm736, %v716
      %750 = vst.msk [vmem:[#allocation3 + $0x34] sm:$0xf] %vm736, %v717
      %751 = vst.msk [vmem:[#allocation3 + $0x38] sm:$0xf] %vm736, %v718
      %752 = vst.msk [vmem:[#allocation3 + $0x3c] sm:$0xf] %vm736, %v719
      %753 = vst.msk [vmem:[#allocation3 + $0x40] sm:$0xf] %vm736, %v720
      %754 = vst.msk [vmem:[#allocation3 + $0x44] sm:$0xf] %vm736, %v721
      %755 = vst.msk [vmem:[#allocation3 + $0x48] sm:$0xf] %vm736, %v722
      %756 = vst.msk [vmem:[#allocation3 + $0x4c] sm:$0xf] %vm736, %v723
      %757 = vst.msk [vmem:[#allocation3 + $0x50] sm:$0xf] %vm736, %v724
      %758 = vst.msk [vmem:[#allocation3 + $0x54] sm:$0xf] %vm736, %v725
      %759 = vst.msk [vmem:[#allocation3 + $0x58] sm:$0xf] %vm736, %v726
      %760 = vst.msk [vmem:[#allocation3 + $0x5c] sm:$0xf] %vm736, %v727
      %761 = vst.msk [vmem:[#allocation3 + $0x60] sm:$0xf] %vm736, %v728
      %762 = vst.msk [vmem:[#allocation3 + $0x64] sm:$0xf] %vm736, %v729
      %763 = vst.msk [vmem:[#allocation3 + $0x68] sm:$0xf] %vm736, %v730
      %764 = vst.msk [vmem:[#allocation3 + $0x6c] sm:$0xf] %vm736, %v731
      %765 = vst.msk [vmem:[#allocation3 + $0x70] sm:$0xf] %vm736, %v732
      %766 = vst.msk [vmem:[#allocation3 + $0x74] sm:$0xf] %vm736, %v733
      %767 = vst.msk [vmem:[#allocation3 + $0x78] sm:$0xf] %vm736, %v734
      %768 = vst.msk [vmem:[#allocation3 + $0x7c] sm:$0xf] %vm736, %v735
      %vm817 = vcmask 1046528
      %v818 = vrot.slane %v650, 1
      %v819 = vrot.slane %v651, 1
      %v820 = vsel %vm817, %v818, %v819
      %v821 = vrot.slane %v652, 1
      %v822 = vsel %vm817, %v819, %v821
      %v823 = vrot.slane %v653, 1
      %v824 = vrot.slane %v654, 1
      %v825 = vsel %vm817, %v823, %v824
      %v826 = vrot.slane %v655, 1
      %v827 = vsel %vm817, %v824, %v826
      %v828 = vrot.slane %v656, 1
      %v829 = vrot.slane %v657, 1
      %v830 = vsel %vm817, %v828, %v829
      %v831 = vrot.slane %v658, 1
      %v832 = vsel %vm817, %v829, %v831
      %v833 = vrot.slane %v659, 1
      %v834 = vrot.slane %v660, 1
      %v835 = vsel %vm817, %v833, %v834
      %v836 = vrot.slane %v661, 1
      %v837 = vsel %vm817, %v834, %v836
      %v838 = vrot.slane %v662, 1
      %v839 = vrot.slane %v663, 1
      %v840 = vsel %vm817, %v838, %v839
      %v841 = vrot.slane %v664, 1
      %v842 = vsel %vm817, %v839, %v841
      %v843 = vrot.slane %v665, 1
      %v844 = vrot.slane %v666, 1
      %v845 = vsel %vm817, %v843, %v844
      %v846 = vrot.slane %v667, 1
      %v847 = vsel %vm817, %v844, %v846
      %v848 = vrot.slane %v668, 1
      %v849 = vrot.slane %v669, 1
      %v850 = vsel %vm817, %v848, %v849
      %v851 = vrot.slane %v670, 1
      %v852 = vsel %vm817, %v849, %v851
      %v853 = vrot.slane %v671, 1
      %v854 = vrot.slane %v672, 1
      %v855 = vsel %vm817, %v853, %v854
      %v856 = vrot.slane %v673, 1
      %v857 = vsel %vm817, %v854, %v856
      %v858 = vrot.slane %v674, 1
      %v859 = vrot.slane %v675, 1
      %v860 = vsel %vm817, %v858, %v859
      %v861 = vrot.slane %v676, 1
      %v862 = vsel %vm817, %v859, %v861
      %v863 = vrot.slane %v677, 1
      %v864 = vrot.slane %v678, 1
      %v865 = vsel %vm817, %v863, %v864
      %v866 = vrot.slane %v679, 1
      %v867 = vsel %vm817, %v864, %v866
      %v868 = vrot.slane %v680, 1
      %v869 = vrot.slane %v681, 1
      %v870 = vsel %vm817, %v868, %v869
      %v871 = vrot.slane %v682, 1
      %v872 = vsel %vm817, %v869, %v871
      %v873 = vrot.slane %v683, 1
      %v874 = vrot.slane %v684, 1
      %v875 = vsel %vm817, %v873, %v874
      %v876 = vrot.slane %v685, 1
      %v877 = vsel %vm817, %v874, %v876
      %v878 = vrot.slane %v686, 1
      %v879 = vrot.slane %v687, 1
      %v880 = vsel %vm817, %v878, %v879
      %v881 = vrot.slane %v688, 1
      %v882 = vsel %vm817, %v879, %v881
      %v883 = vrot.slane %v689, 1
      %v884 = vrot.slane %v690, 1
      %v885 = vsel %vm817, %v883, %v884
      %v886 = vrot.slane %v691, 1
      %v887 = vsel %vm817, %v884, %v886
      %v888 = vrot.slane %v692, 1
      %v889 = vrot.slane %v693, 1
      %v890 = vsel %vm817, %v888, %v889
      %v891 = vrot.slane %v694, 1
      %v892 = vsel %vm817, %v889, %v891
      %v893 = vrot.slane %v695, 1
      %v894 = vrot.slane %v696, 1
      %v895 = vsel %vm817, %v893, %v894
      %v896 = vrot.slane %v697, 1
      %v897 = vsel %vm817, %v894, %v896
      %v930 = vpack.c.bf16 %v820, %v820
      %v931 = vpack.c.bf16 %v822, %v822
      %v932 = vpack.c.bf16 %v825, %v825
      %v933 = vpack.c.bf16 %v827, %v827
      %v934 = vpack.c.bf16 %v830, %v830
      %v935 = vpack.c.bf16 %v832, %v832
      %v936 = vpack.c.bf16 %v835, %v835
      %v937 = vpack.c.bf16 %v837, %v837
      %v938 = vpack.c.bf16 %v840, %v840
      %v939 = vpack.c.bf16 %v842, %v842
      %v940 = vpack.c.bf16 %v845, %v845
      %v941 = vpack.c.bf16 %v847, %v847
      %v942 = vpack.c.bf16 %v850, %v850
      %v943 = vpack.c.bf16 %v852, %v852
      %v944 = vpack.c.bf16 %v855, %v855
      %v945 = vpack.c.bf16 %v857, %v857
      %v946 = vpack.c.bf16 %v860, %v860
      %v947 = vpack.c.bf16 %v862, %v862
      %v948 = vpack.c.bf16 %v865, %v865
      %v949 = vpack.c.bf16 %v867, %v867
      %v950 = vpack.c.bf16 %v870, %v870
      %v951 = vpack.c.bf16 %v872, %v872
      %v952 = vpack.c.bf16 %v875, %v875
      %v953 = vpack.c.bf16 %v877, %v877
      %v954 = vpack.c.bf16 %v880, %v880
      %v955 = vpack.c.bf16 %v882, %v882
      %v956 = vpack.c.bf16 %v885, %v885
      %v957 = vpack.c.bf16 %v887, %v887
      %v958 = vpack.c.bf16 %v890, %v890
      %v959 = vpack.c.bf16 %v892, %v892
      %v960 = vpack.c.bf16 %v895, %v895
      %v961 = vpack.c.bf16 %v897, %v897
      %994 = vrot.lane.b32.xlu0 %v930, 8
      %v995 = vpop.permute.xlu0 %994
      %996 = vrot.lane.b32.xlu0 %v931, 8
      %v997 = vpop.permute.xlu0 %996
      %998 = vrot.lane.b32.xlu0 %v932, 8
      %v999 = vpop.permute.xlu0 %998
      %1000 = vrot.lane.b32.xlu0 %v933, 8
      %v1001 = vpop.permute.xlu0 %1000
      %1002 = vrot.lane.b32.xlu0 %v934, 8
      %v1003 = vpop.permute.xlu0 %1002
      %1004 = vrot.lane.b32.xlu0 %v935, 8
      %v1005 = vpop.permute.xlu0 %1004
      %1006 = vrot.lane.b32.xlu0 %v936, 8
      %v1007 = vpop.permute.xlu0 %1006
      %1008 = vrot.lane.b32.xlu0 %v937, 8
      %v1009 = vpop.permute.xlu0 %1008
      %1010 = vrot.lane.b32.xlu0 %v938, 8
      %v1011 = vpop.permute.xlu0 %1010
      %1012 = vrot.lane.b32.xlu0 %v939, 8
      %v1013 = vpop.permute.xlu0 %1012
      %1014 = vrot.lane.b32.xlu0 %v940, 8
      %v1015 = vpop.permute.xlu0 %1014
      %1016 = vrot.lane.b32.xlu0 %v941, 8
      %v1017 = vpop.permute.xlu0 %1016
      %1018 = vrot.lane.b32.xlu0 %v942, 8
      %v1019 = vpop.permute.xlu0 %1018
      %1020 = vrot.lane.b32.xlu0 %v943, 8
      %v1021 = vpop.permute.xlu0 %1020
      %1022 = vrot.lane.b32.xlu0 %v944, 8
      %v1023 = vpop.permute.xlu0 %1022
      %1024 = vrot.lane.b32.xlu0 %v945, 8
      %v1025 = vpop.permute.xlu0 %1024
      %1026 = vrot.lane.b32.xlu0 %v946, 8
      %v1027 = vpop.permute.xlu0 %1026
      %1028 = vrot.lane.b32.xlu0 %v947, 8
      %v1029 = vpop.permute.xlu0 %1028
      %1030 = vrot.lane.b32.xlu0 %v948, 8
      %v1031 = vpop.permute.xlu0 %1030
      %1032 = vrot.lane.b32.xlu0 %v949, 8
      %v1033 = vpop.permute.xlu0 %1032
      %1034 = vrot.lane.b32.xlu0 %v950, 8
      %v1035 = vpop.permute.xlu0 %1034
      %1036 = vrot.lane.b32.xlu0 %v951, 8
      %v1037 = vpop.permute.xlu0 %1036
      %1038 = vrot.lane.b32.xlu0 %v952, 8
      %v1039 = vpop.permute.xlu0 %1038
      %1040 = vrot.lane.b32.xlu0 %v953, 8
      %v1041 = vpop.permute.xlu0 %1040
      %1042 = vrot.lane.b32.xlu0 %v954, 8
      %v1043 = vpop.permute.xlu0 %1042
      %1044 = vrot.lane.b32.xlu0 %v955, 8
      %v1045 = vpop.permute.xlu0 %1044
      %1046 = vrot.lane.b32.xlu0 %v956, 8
      %v1047 = vpop.permute.xlu0 %1046
      %1048 = vrot.lane.b32.xlu0 %v957, 8
      %v1049 = vpop.permute.xlu0 %1048
      %1050 = vrot.lane.b32.xlu0 %v958, 8
      %v1051 = vpop.permute.xlu0 %1050
      %1052 = vrot.lane.b32.xlu0 %v959, 8
      %v1053 = vpop.permute.xlu0 %1052
      %1054 = vrot.lane.b32.xlu0 %v960, 8
      %v1055 = vpop.permute.xlu0 %1054
      %1056 = vrot.lane.b32.xlu0 %v961, 8
      %v1057 = vpop.permute.xlu0 %1056
      %vm1090 = vcmask 126016
      %1091 = vst.msk [vmem:[#allocation3] sm:$0xf] %vm1090, %v995
      %1092 = vst.msk [vmem:[#allocation3 + $0x4] sm:$0xf] %vm1090, %v997
      %1093 = vst.msk [vmem:[#allocation3 + $0x8] sm:$0xf] %vm1090, %v999
      %1094 = vst.msk [vmem:[#allocation3 + $0xc] sm:$0xf] %vm1090, %v1001
      %1095 = vst.msk [vmem:[#allocation3 + $0x10] sm:$0xf] %vm1090, %v1003
      %1096 = vst.msk [vmem:[#allocation3 + $0x14] sm:$0xf] %vm1090, %v1005
      %1097 = vst.msk [vmem:[#allocation3 + $0x18] sm:$0xf] %vm1090, %v1007
      %1098 = vst.msk [vmem:[#allocation3 + $0x1c] sm:$0xf] %vm1090, %v1009
      %1099 = vst.msk [vmem:[#allocation3 + $0x20] sm:$0xf] %vm1090, %v1011
      %1100 = vst.msk [vmem:[#allocation3 + $0x24] sm:$0xf] %vm1090, %v1013
      %1101 = vst.msk [vmem:[#allocation3 + $0x28] sm:$0xf] %vm1090, %v1015
      %1102 = vst.msk [vmem:[#allocation3 + $0x2c] sm:$0xf] %vm1090, %v1017
      %1103 = vst.msk [vmem:[#allocation3 + $0x30] sm:$0xf] %vm1090, %v1019
      %1104 = vst.msk [vmem:[#allocation3 + $0x34] sm:$0xf] %vm1090, %v1021
      %1105 = vst.msk [vmem:[#allocation3 + $0x38] sm:$0xf] %vm1090, %v1023
      %1106 = vst.msk [vmem:[#allocation3 + $0x3c] sm:$0xf] %vm1090, %v1025
      %1107 = vst.msk [vmem:[#allocation3 + $0x40] sm:$0xf] %vm1090, %v1027
      %1108 = vst.msk [vmem:[#allocation3 + $0x44] sm:$0xf] %vm1090, %v1029
      %1109 = vst.msk [vmem:[#allocation3 + $0x48] sm:$0xf] %vm1090, %v1031
      %1110 = vst.msk [vmem:[#allocation3 + $0x4c] sm:$0xf] %vm1090, %v1033
      %1111 = vst.msk [vmem:[#allocation3 + $0x50] sm:$0xf] %vm1090, %v1035
      %1112 = vst.msk [vmem:[#allocation3 + $0x54] sm:$0xf] %vm1090, %v1037
      %1113 = vst.msk [vmem:[#allocation3 + $0x58] sm:$0xf] %vm1090, %v1039
      %1114 = vst.msk [vmem:[#allocation3 + $0x5c] sm:$0xf] %vm1090, %v1041
      %1115 = vst.msk [vmem:[#allocation3 + $0x60] sm:$0xf] %vm1090, %v1043
      %1116 = vst.msk [vmem:[#allocation3 + $0x64] sm:$0xf] %vm1090, %v1045
      %1117 = vst.msk [vmem:[#allocation3 + $0x68] sm:$0xf] %vm1090, %v1047
      %1118 = vst.msk [vmem:[#allocation3 + $0x6c] sm:$0xf] %vm1090, %v1049
      %1119 = vst.msk [vmem:[#allocation3 + $0x70] sm:$0xf] %vm1090, %v1051
      %1120 = vst.msk [vmem:[#allocation3 + $0x74] sm:$0xf] %vm1090, %v1053
      %1121 = vst.msk [vmem:[#allocation3 + $0x78] sm:$0xf] %vm1090, %v1055
      %1122 = vst.msk [vmem:[#allocation3 + $0x7c] sm:$0xf] %vm1090, %v1057
      %vm1123 = vcmask 1045504
      %v1124 = vrot.slane %v650, 2
      %v1125 = vrot.slane %v651, 2
      %v1126 = vsel %vm1123, %v1124, %v1125
      %v1127 = vrot.slane %v652, 2
      %v1128 = vsel %vm1123, %v1125, %v1127
      %v1129 = vrot.slane %v653, 2
      %v1130 = vrot.slane %v654, 2
      %v1131 = vsel %vm1123, %v1129, %v1130
      %v1132 = vrot.slane %v655, 2
      %v1133 = vsel %vm1123, %v1130, %v1132
      %v1134 = vrot.slane %v656, 2
      %v1135 = vrot.slane %v657, 2
      %v1136 = vsel %vm1123, %v1134, %v1135
      %v1137 = vrot.slane %v658, 2
      %v1138 = vsel %vm1123, %v1135, %v1137
      %v1139 = vrot.slane %v659, 2
      %v1140 = vrot.slane %v660, 2
      %v1141 = vsel %vm1123, %v1139, %v1140
      %v1142 = vrot.slane %v661, 2
      %v1143 = vsel %vm1123, %v1140, %v1142
      %v1144 = vrot.slane %v662, 2
      %v1145 = vrot.slane %v663, 2
      %v1146 = vsel %vm1123, %v1144, %v1145
      %v1147 = vrot.slane %v664, 2
      %v1148 = vsel %vm1123, %v1145, %v1147
      %v1149 = vrot.slane %v665, 2
      %v1150 = vrot.slane %v666, 2
      %v1151 = vsel %vm1123, %v1149, %v1150
      %v1152 = vrot.slane %v667, 2
      %v1153 = vsel %vm1123, %v1150, %v1152
      %v1154 = vrot.slane %v668, 2
      %v1155 = vrot.slane %v669, 2
      %v1156 = vsel %vm1123, %v1154, %v1155
      %v1157 = vrot.slane %v670, 2
      %v1158 = vsel %vm1123, %v1155, %v1157
      %v1159 = vrot.slane %v671, 2
      %v1160 = vrot.slane %v672, 2
      %v1161 = vsel %vm1123, %v1159, %v1160
      %v1162 = vrot.slane %v673, 2
      %v1163 = vsel %vm1123, %v1160, %v1162
      %v1164 = vrot.slane %v674, 2
      %v1165 = vrot.slane %v675, 2
      %v1166 = vsel %vm1123, %v1164, %v1165
      %v1167 = vrot.slane %v676, 2
      %v1168 = vsel %vm1123, %v1165, %v1167
      %v1169 = vrot.slane %v677, 2
      %v1170 = vrot.slane %v678, 2
      %v1171 = vsel %vm1123, %v1169, %v1170
      %v1172 = vrot.slane %v679, 2
      %v1173 = vsel %vm1123, %v1170, %v1172
      %v1174 = vrot.slane %v680, 2
      %v1175 = vrot.slane %v681, 2
      %v1176 = vsel %vm1123, %v1174, %v1175
      %v1177 = vrot.slane %v682, 2
      %v1178 = vsel %vm1123, %v1175, %v1177
      %v1179 = vrot.slane %v683, 2
      %v1180 = vrot.slane %v684, 2
      %v1181 = vsel %vm1123, %v1179, %v1180
      %v1182 = vrot.slane %v685, 2
      %v1183 = vsel %vm1123, %v1180, %v1182
      %v1184 = vrot.slane %v686, 2
      %v1185 = vrot.slane %v687, 2
      %v1186 = vsel %vm1123, %v1184, %v1185
      %v1187 = vrot.slane %v688, 2
      %v1188 = vsel %vm1123, %v1185, %v1187
      %v1189 = vrot.slane %v689, 2
      %v1190 = vrot.slane %v690, 2
      %v1191 = vsel %vm1123, %v1189, %v1190
      %v1192 = vrot.slane %v691, 2
      %v1193 = vsel %vm1123, %v1190, %v1192
      %v1194 = vrot.slane %v692, 2
      %v1195 = vrot.slane %v693, 2
      %v1196 = vsel %vm1123, %v1194, %v1195
      %v1197 = vrot.slane %v694, 2
      %v1198 = vsel %vm1123, %v1195, %v1197
      %v1199 = vrot.slane %v695, 2
      %v1200 = vrot.slane %v696, 2
      %v1201 = vsel %vm1123, %v1199, %v1200
      %v1202 = vrot.slane %v697, 2
      %v1203 = vsel %vm1123, %v1200, %v1202
      %v1236 = vpack.c.bf16 %v1126, %v1126
      %v1237 = vpack.c.bf16 %v1128, %v1128
      %v1238 = vpack.c.bf16 %v1131, %v1131
      %v1239 = vpack.c.bf16 %v1133, %v1133
      %v1240 = vpack.c.bf16 %v1136, %v1136
      %v1241 = vpack.c.bf16 %v1138, %v1138
      %v1242 = vpack.c.bf16 %v1141, %v1141
      %v1243 = vpack.c.bf16 %v1143, %v1143
      %v1244 = vpack.c.bf16 %v1146, %v1146
      %v1245 = vpack.c.bf16 %v1148, %v1148
      %v1246 = vpack.c.bf16 %v1151, %v1151
      %v1247 = vpack.c.bf16 %v1153, %v1153
      %v1248 = vpack.c.bf16 %v1156, %v1156
      %v1249 = vpack.c.bf16 %v1158, %v1158
      %v1250 = vpack.c.bf16 %v1161, %v1161
      %v1251 = vpack.c.bf16 %v1163, %v1163
      %v1252 = vpack.c.bf16 %v1166, %v1166
      %v1253 = vpack.c.bf16 %v1168, %v1168
      %v1254 = vpack.c.bf16 %v1171, %v1171
      %v1255 = vpack.c.bf16 %v1173, %v1173
      %v1256 = vpack.c.bf16 %v1176, %v1176
      %v1257 = vpack.c.bf16 %v1178, %v1178
      %v1258 = vpack.c.bf16 %v1181, %v1181
      %v1259 = vpack.c.bf16 %v1183, %v1183
      %v1260 = vpack.c.bf16 %v1186, %v1186
      %v1261 = vpack.c.bf16 %v1188, %v1188
      %v1262 = vpack.c.bf16 %v1191, %v1191
      %v1263 = vpack.c.bf16 %v1193, %v1193
      %v1264 = vpack.c.bf16 %v1196, %v1196
      %v1265 = vpack.c.bf16 %v1198, %v1198
      %v1266 = vpack.c.bf16 %v1201, %v1201
      %v1267 = vpack.c.bf16 %v1203, %v1203
      %1300 = vrot.lane.b32.xlu0 %v1236, 16
      %v1301 = vpop.permute.xlu0 %1300
      %1302 = vrot.lane.b32.xlu0 %v1237, 16
      %v1303 = vpop.permute.xlu0 %1302
      %1304 = vrot.lane.b32.xlu0 %v1238, 16
      %v1305 = vpop.permute.xlu0 %1304
      %1306 = vrot.lane.b32.xlu0 %v1239, 16
      %v1307 = vpop.permute.xlu0 %1306
      %1308 = vrot.lane.b32.xlu0 %v1240, 16
      %v1309 = vpop.permute.xlu0 %1308
      %1310 = vrot.lane.b32.xlu0 %v1241, 16
      %v1311 = vpop.permute.xlu0 %1310
      %1312 = vrot.lane.b32.xlu0 %v1242, 16
      %v1313 = vpop.permute.xlu0 %1312
      %1314 = vrot.lane.b32.xlu0 %v1243, 16
      %v1315 = vpop.permute.xlu0 %1314
      %1316 = vrot.lane.b32.xlu0 %v1244, 16
      %v1317 = vpop.permute.xlu0 %1316
      %1318 = vrot.lane.b32.xlu0 %v1245, 16
      %v1319 = vpop.permute.xlu0 %1318
      %1320 = vrot.lane.b32.xlu0 %v1246, 16
      %v1321 = vpop.permute.xlu0 %1320
      %1322 = vrot.lane.b32.xlu0 %v1247, 16
      %v1323 = vpop.permute.xlu0 %1322
      %1324 = vrot.lane.b32.xlu0 %v1248, 16
      %v1325 = vpop.permute.xlu0 %1324
      %1326 = vrot.lane.b32.xlu0 %v1249, 16
      %v1327 = vpop.permute.xlu0 %1326
      %1328 = vrot.lane.b32.xlu0 %v1250, 16
      %v1329 = vpop.permute.xlu0 %1328
      %1330 = vrot.lane.b32.xlu0 %v1251, 16
      %v1331 = vpop.permute.xlu0 %1330
      %1332 = vrot.lane.b32.xlu0 %v1252, 16
      %v1333 = vpop.permute.xlu0 %1332
      %1334 = vrot.lane.b32.xlu0 %v1253, 16
      %v1335 = vpop.permute.xlu0 %1334
      %1336 = vrot.lane.b32.xlu0 %v1254, 16
      %v1337 = vpop.permute.xlu0 %1336
      %1338 = vrot.lane.b32.xlu0 %v1255, 16
      %v1339 = vpop.permute.xlu0 %1338
      %1340 = vrot.lane.b32.xlu0 %v1256, 16
      %v1341 = vpop.permute.xlu0 %1340
      %1342 = vrot.lane.b32.xlu0 %v1257, 16
      %v1343 = vpop.permute.xlu0 %1342
      %1344 = vrot.lane.b32.xlu0 %v1258, 16
      %v1345 = vpop.permute.xlu0 %1344
      %1346 = vrot.lane.b32.xlu0 %v1259, 16
      %v1347 = vpop.permute.xlu0 %1346
      %1348 = vrot.lane.b32.xlu0 %v1260, 16
      %v1349 = vpop.permute.xlu0 %1348
      %1350 = vrot.lane.b32.xlu0 %v1261, 16
      %v1351 = vpop.permute.xlu0 %1350
      %1352 = vrot.lane.b32.xlu0 %v1262, 16
      %v1353 = vpop.permute.xlu0 %1352
      %1354 = vrot.lane.b32.xlu0 %v1263, 16
      %v1355 = vpop.permute.xlu0 %1354
      %1356 = vrot.lane.b32.xlu0 %v1264, 16
      %v1357 = vpop.permute.xlu0 %1356
      %1358 = vrot.lane.b32.xlu0 %v1265, 16
      %v1359 = vpop.permute.xlu0 %1358
      %1360 = vrot.lane.b32.xlu0 %v1266, 16
      %v1361 = vpop.permute.xlu0 %1360
      %1362 = vrot.lane.b32.xlu0 %v1267, 16
      %v1363 = vpop.permute.xlu0 %1362
      %vm1396 = vcmask 191616
      %1397 = vst.msk [vmem:[#allocation3] sm:$0xf] %vm1396, %v1301
      %1398 = vst.msk [vmem:[#allocation3 + $0x4] sm:$0xf] %vm1396, %v1303
      %1399 = vst.msk [vmem:[#allocation3 + $0x8] sm:$0xf] %vm1396, %v1305
      %1400 = vst.msk [vmem:[#allocation3 + $0xc] sm:$0xf] %vm1396, %v1307
      %1401 = vst.msk [vmem:[#allocation3 + $0x10] sm:$0xf] %vm1396, %v1309
      %1402 = vst.msk [vmem:[#allocation3 + $0x14] sm:$0xf] %vm1396, %v1311
      %1403 = vst.msk [vmem:[#allocation3 + $0x18] sm:$0xf] %vm1396, %v1313
      %1404 = vst.msk [vmem:[#allocation3 + $0x1c] sm:$0xf] %vm1396, %v1315
      %1405 = vst.msk [vmem:[#allocation3 + $0x20] sm:$0xf] %vm1396, %v1317
      %1406 = vst.msk [vmem:[#allocation3 + $0x24] sm:$0xf] %vm1396, %v1319
      %1407 = vst.msk [vmem:[#allocation3 + $0x28] sm:$0xf] %vm1396, %v1321
      %1408 = vst.msk [vmem:[#allocation3 + $0x2c] sm:$0xf] %vm1396, %v1323
      %1409 = vst.msk [vmem:[#allocation3 + $0x30] sm:$0xf] %vm1396, %v1325
      %1410 = vst.msk [vmem:[#allocation3 + $0x34] sm:$0xf] %vm1396, %v1327
      %1411 = vst.msk [vmem:[#allocation3 + $0x38] sm:$0xf] %vm1396, %v1329
      %1412 = vst.msk [vmem:[#allocation3 + $0x3c] sm:$0xf] %vm1396, %v1331
      %1413 = vst.msk [vmem:[#allocation3 + $0x40] sm:$0xf] %vm1396, %v1333
      %1414 = vst.msk [vmem:[#allocation3 + $0x44] sm:$0xf] %vm1396, %v1335
      %1415 = vst.msk [vmem:[#allocation3 + $0x48] sm:$0xf] %vm1396, %v1337
      %1416 = vst.msk [vmem:[#allocation3 + $0x4c] sm:$0xf] %vm1396, %v1339
      %1417 = vst.msk [vmem:[#allocation3 + $0x50] sm:$0xf] %vm1396, %v1341
      %1418 = vst.msk [vmem:[#allocation3 + $0x54] sm:$0xf] %vm1396, %v1343
      %1419 = vst.msk [vmem:[#allocation3 + $0x58] sm:$0xf] %vm1396, %v1345
      %1420 = vst.msk [vmem:[#allocation3 + $0x5c] sm:$0xf] %vm1396, %v1347
      %1421 = vst.msk [vmem:[#allocation3 + $0x60] sm:$0xf] %vm1396, %v1349
      %1422 = vst.msk [vmem:[#allocation3 + $0x64] sm:$0xf] %vm1396, %v1351
      %1423 = vst.msk [vmem:[#allocation3 + $0x68] sm:$0xf] %vm1396, %v1353
      %1424 = vst.msk [vmem:[#allocation3 + $0x6c] sm:$0xf] %vm1396, %v1355
      %1425 = vst.msk [vmem:[#allocation3 + $0x70] sm:$0xf] %vm1396, %v1357
      %1426 = vst.msk [vmem:[#allocation3 + $0x74] sm:$0xf] %vm1396, %v1359
      %1427 = vst.msk [vmem:[#allocation3 + $0x78] sm:$0xf] %vm1396, %v1361
      %1428 = vst.msk [vmem:[#allocation3 + $0x7c] sm:$0xf] %vm1396, %v1363
      %v1429 = vpack.c.bf16 %v698, %v698
      %v1430 = vpack.c.bf16 %v699, %v699
      %1463 = vrot.lane.b32.xlu0 %v706, 24
      %v1464 = vpop.permute.xlu0 %1463
      %1465 = vrot.lane.b32.xlu0 %v707, 24
      %v1466 = vpop.permute.xlu0 %1465
      %1467 = vrot.lane.b32.xlu0 %v708, 24
      %v1468 = vpop.permute.xlu0 %1467
      %1469 = vrot.lane.b32.xlu0 %v709, 24
      %v1470 = vpop.permute.xlu0 %1469
      %1471 = vrot.lane.b32.xlu0 %v710, 24
      %v1472 = vpop.permute.xlu0 %1471
      %1473 = vrot.lane.b32.xlu0 %v711, 24
      %v1474 = vpop.permute.xlu0 %1473
      %1475 = vrot.lane.b32.xlu0 %v712, 24
      %v1476 = vpop.permute.xlu0 %1475
      %1477 = vrot.lane.b32.xlu0 %v713, 24
      %v1478 = vpop.permute.xlu0 %1477
      %1479 = vrot.lane.b32.xlu0 %v714, 24
      %v1480 = vpop.permute.xlu0 %1479
      %1481 = vrot.lane.b32.xlu0 %v715, 24
      %v1482 = vpop.permute.xlu0 %1481
      %1483 = vrot.lane.b32.xlu0 %v716, 24
      %v1484 = vpop.permute.xlu0 %1483
      %1485 = vrot.lane.b32.xlu0 %v717, 24
      %v1486 = vpop.permute.xlu0 %1485
      %1487 = vrot.lane.b32.xlu0 %v718, 24
      %v1488 = vpop.permute.xlu0 %1487
      %1489 = vrot.lane.b32.xlu0 %v719, 24
      %v1490 = vpop.permute.xlu0 %1489
      %1491 = vrot.lane.b32.xlu0 %v720, 24
      %v1492 = vpop.permute.xlu0 %1491
      %1493 = vrot.lane.b32.xlu0 %v721, 24
      %v1494 = vpop.permute.xlu0 %1493
      %1495 = vrot.lane.b32.xlu0 %v722, 24
      %v1496 = vpop.permute.xlu0 %1495
      %1497 = vrot.lane.b32.xlu0 %v723, 24
      %v1498 = vpop.permute.xlu0 %1497
      %1499 = vrot.lane.b32.xlu0 %v724, 24
      %v1500 = vpop.permute.xlu0 %1499
      %1501 = vrot.lane.b32.xlu0 %v725, 24
      %v1502 = vpop.permute.xlu0 %1501
      %1503 = vrot.lane.b32.xlu0 %v726, 24
      %v1504 = vpop.permute.xlu0 %1503
      %1505 = vrot.lane.b32.xlu0 %v727, 24
      %v1506 = vpop.permute.xlu0 %1505
      %1507 = vrot.lane.b32.xlu0 %v728, 24
      %v1508 = vpop.permute.xlu0 %1507
      %1509 = vrot.lane.b32.xlu0 %v729, 24
      %v1510 = vpop.permute.xlu0 %1509
      %1511 = vrot.lane.b32.xlu0 %v730, 24
      %v1512 = vpop.permute.xlu0 %1511
      %1513 = vrot.lane.b32.xlu0 %v731, 24
      %v1514 = vpop.permute.xlu0 %1513
      %1515 = vrot.lane.b32.xlu0 %v732, 24
      %v1516 = vpop.permute.xlu0 %1515
      %1517 = vrot.lane.b32.xlu0 %v733, 24
      %v1518 = vpop.permute.xlu0 %1517
      %1519 = vrot.lane.b32.xlu0 %v734, 24
      %v1520 = vpop.permute.xlu0 %1519
      %1521 = vrot.lane.b32.xlu0 %v735, 24
      %v1522 = vpop.permute.xlu0 %1521
      %1523 = vrot.lane.b32.xlu0 %v1429, 24
      %v1524 = vpop.permute.xlu0 %1523
      %1525 = vrot.lane.b32.xlu0 %v1430, 24
      %v1526 = vpop.permute.xlu0 %1525
      %vm1559 = vcmask 257216
      %1560 = vst.msk [vmem:[#allocation3] sm:$0xf] %vm1559, %v1464
      %1561 = vst.msk [vmem:[#allocation3 + $0x4] sm:$0xf] %vm1559, %v1466
      %1562 = vst.msk [vmem:[#allocation3 + $0x8] sm:$0xf] %vm1559, %v1468
      %1563 = vst.msk [vmem:[#allocation3 + $0xc] sm:$0xf] %vm1559, %v1470
      %1564 = vst.msk [vmem:[#allocation3 + $0x10] sm:$0xf] %vm1559, %v1472
      %1565 = vst.msk [vmem:[#allocation3 + $0x14] sm:$0xf] %vm1559, %v1474
      %1566 = vst.msk [vmem:[#allocation3 + $0x18] sm:$0xf] %vm1559, %v1476
      %1567 = vst.msk [vmem:[#allocation3 + $0x1c] sm:$0xf] %vm1559, %v1478
      %1568 = vst.msk [vmem:[#allocation3 + $0x20] sm:$0xf] %vm1559, %v1480
      %1569 = vst.msk [vmem:[#allocation3 + $0x24] sm:$0xf] %vm1559, %v1482
      %1570 = vst.msk [vmem:[#allocation3 + $0x28] sm:$0xf] %vm1559, %v1484
      %1571 = vst.msk [vmem:[#allocation3 + $0x2c] sm:$0xf] %vm1559, %v1486
      %1572 = vst.msk [vmem:[#allocation3 + $0x30] sm:$0xf] %vm1559, %v1488
      %1573 = vst.msk [vmem:[#allocation3 + $0x34] sm:$0xf] %vm1559, %v1490
      %1574 = vst.msk [vmem:[#allocation3 + $0x38] sm:$0xf] %vm1559, %v1492
      %1575 = vst.msk [vmem:[#allocation3 + $0x3c] sm:$0xf] %vm1559, %v1494
      %1576 = vst.msk [vmem:[#allocation3 + $0x40] sm:$0xf] %vm1559, %v1496
      %1577 = vst.msk [vmem:[#allocation3 + $0x44] sm:$0xf] %vm1559, %v1498
      %1578 = vst.msk [vmem:[#allocation3 + $0x48] sm:$0xf] %vm1559, %v1500
      %1579 = vst.msk [vmem:[#allocation3 + $0x4c] sm:$0xf] %vm1559, %v1502
      %1580 = vst.msk [vmem:[#allocation3 + $0x50] sm:$0xf] %vm1559, %v1504
      %1581 = vst.msk [vmem:[#allocation3 + $0x54] sm:$0xf] %vm1559, %v1506
      %1582 = vst.msk [vmem:[#allocation3 + $0x58] sm:$0xf] %vm1559, %v1508
      %1583 = vst.msk [vmem:[#allocation3 + $0x5c] sm:$0xf] %vm1559, %v1510
      %1584 = vst.msk [vmem:[#allocation3 + $0x60] sm:$0xf] %vm1559, %v1512
      %1585 = vst.msk [vmem:[#allocation3 + $0x64] sm:$0xf] %vm1559, %v1514
      %1586 = vst.msk [vmem:[#allocation3 + $0x68] sm:$0xf] %vm1559, %v1516
      %1587 = vst.msk [vmem:[#allocation3 + $0x6c] sm:$0xf] %vm1559, %v1518
      %1588 = vst.msk [vmem:[#allocation3 + $0x70] sm:$0xf] %vm1559, %v1520
      %1589 = vst.msk [vmem:[#allocation3 + $0x74] sm:$0xf] %vm1559, %v1522
      %1590 = vst.msk [vmem:[#allocation3 + $0x78] sm:$0xf] %vm1559, %v1524
      %1591 = vst.msk [vmem:[#allocation3 + $0x7c] sm:$0xf] %vm1559, %v1526
      %v1595 = vrot.slane %v698, 1
      %v1596 = vrot.slane %v699, 1
      %v1597 = vsel %vm817, %v1595, %v1596
      %v1598 = vrot.slane %v700, 1
      %v1599 = vsel %vm817, %v1596, %v1598
      %v1602 = vpack.c.bf16 %v1597, %v1597
      %v1603 = vpack.c.bf16 %v1599, %v1599
      %1606 = vrot.lane.b32.xlu0 %v932, 32
      %v1607 = vpop.permute.xlu0 %1606
      %1608 = vrot.lane.b32.xlu0 %v933, 32
      %v1609 = vpop.permute.xlu0 %1608
      %1610 = vrot.lane.b32.xlu0 %v934, 32
      %v1611 = vpop.permute.xlu0 %1610
      %1612 = vrot.lane.b32.xlu0 %v935, 32
      %v1613 = vpop.permute.xlu0 %1612
      %1614 = vrot.lane.b32.xlu0 %v936, 32
      %v1615 = vpop.permute.xlu0 %1614
      %1616 = vrot.lane.b32.xlu0 %v937, 32
      %v1617 = vpop.permute.xlu0 %1616
      %1618 = vrot.lane.b32.xlu0 %v938, 32
      %v1619 = vpop.permute.xlu0 %1618
      %1620 = vrot.lane.b32.xlu0 %v939, 32
      %v1621 = vpop.permute.xlu0 %1620
      %1622 = vrot.lane.b32.xlu0 %v940, 32
      %v1623 = vpop.permute.xlu0 %1622
      %1624 = vrot.lane.b32.xlu0 %v941, 32
      %v1625 = vpop.permute.xlu0 %1624
      %1626 = vrot.lane.b32.xlu0 %v942, 32
      %v1627 = vpop.permute.xlu0 %1626
      %1628 = vrot.lane.b32.xlu0 %v943, 32
      %v1629 = vpop.permute.xlu0 %1628
      %1630 = vrot.lane.b32.xlu0 %v944, 32
      %v1631 = vpop.permute.xlu0 %1630
      %1632 = vrot.lane.b32.xlu0 %v945, 32
      %v1633 = vpop.permute.xlu0 %1632
      %1634 = vrot.lane.b32.xlu0 %v946, 32
      %v1635 = vpop.permute.xlu0 %1634
      %1636 = vrot.lane.b32.xlu0 %v947, 32
      %v1637 = vpop.permute.xlu0 %1636
      %1638 = vrot.lane.b32.xlu0 %v948, 32
      %v1639 = vpop.permute.xlu0 %1638
      %1640 = vrot.lane.b32.xlu0 %v949, 32
      %v1641 = vpop.permute.xlu0 %1640
      %1642 = vrot.lane.b32.xlu0 %v950, 32
      %v1643 = vpop.permute.xlu0 %1642
      %1644 = vrot.lane.b32.xlu0 %v951, 32
      %v1645 = vpop.permute.xlu0 %1644
      %1646 = vrot.lane.b32.xlu0 %v952, 32
      %v1647 = vpop.permute.xlu0 %1646
      %1648 = vrot.lane.b32.xlu0 %v953, 32
      %v1649 = vpop.permute.xlu0 %1648
      %1650 = vrot.lane.b32.xlu0 %v954, 32
      %v1651 = vpop.permute.xlu0 %1650
      %1652 = vrot.lane.b32.xlu0 %v955, 32
      %v1653 = vpop.permute.xlu0 %1652
      %1654 = vrot.lane.b32.xlu0 %v956, 32
      %v1655 = vpop.permute.xlu0 %1654
      %1656 = vrot.lane.b32.xlu0 %v957, 32
      %v1657 = vpop.permute.xlu0 %1656
      %1658 = vrot.lane.b32.xlu0 %v958, 32
      %v1659 = vpop.permute.xlu0 %1658
      %1660 = vrot.lane.b32.xlu0 %v959, 32
      %v1661 = vpop.permute.xlu0 %1660
      %1662 = vrot.lane.b32.xlu0 %v960, 32
      %v1663 = vpop.permute.xlu0 %1662
      %1664 = vrot.lane.b32.xlu0 %v961, 32
      %v1665 = vpop.permute.xlu0 %1664
      %1666 = vrot.lane.b32.xlu0 %v1602, 32
      %v1667 = vpop.permute.xlu0 %1666
      %1668 = vrot.lane.b32.xlu0 %v1603, 32
      %v1669 = vpop.permute.xlu0 %1668
      %vm1702 = vcmask 322816
      %1703 = vst.msk [vmem:[#allocation3] sm:$0xf] %vm1702, %v1607
      %1704 = vst.msk [vmem:[#allocation3 + $0x4] sm:$0xf] %vm1702, %v1609
      %1705 = vst.msk [vmem:[#allocation3 + $0x8] sm:$0xf] %vm1702, %v1611
      %1706 = vst.msk [vmem:[#allocation3 + $0xc] sm:$0xf] %vm1702, %v1613
      %1707 = vst.msk [vmem:[#allocation3 + $0x10] sm:$0xf] %vm1702, %v1615
      %1708 = vst.msk [vmem:[#allocation3 + $0x14] sm:$0xf] %vm1702, %v1617
      %1709 = vst.msk [vmem:[#allocation3 + $0x18] sm:$0xf] %vm1702, %v1619
      %1710 = vst.msk [vmem:[#allocation3 + $0x1c] sm:$0xf] %vm1702, %v1621
      %1711 = vst.msk [vmem:[#allocation3 + $0x20] sm:$0xf] %vm1702, %v1623
      %1712 = vst.msk [vmem:[#allocation3 + $0x24] sm:$0xf] %vm1702, %v1625
      %1713 = vst.msk [vmem:[#allocation3 + $0x28] sm:$0xf] %vm1702, %v1627
      %1714 = vst.msk [vmem:[#allocation3 + $0x2c] sm:$0xf] %vm1702, %v1629
      %1715 = vst.msk [vmem:[#allocation3 + $0x30] sm:$0xf] %vm1702, %v1631
      %1716 = vst.msk [vmem:[#allocation3 + $0x34] sm:$0xf] %vm1702, %v1633
      %1717 = vst.msk [vmem:[#allocation3 + $0x38] sm:$0xf] %vm1702, %v1635
      %1718 = vst.msk [vmem:[#allocation3 + $0x3c] sm:$0xf] %vm1702, %v1637
      %1719 = vst.msk [vmem:[#allocation3 + $0x40] sm:$0xf] %vm1702, %v1639
      %1720 = vst.msk [vmem:[#allocation3 + $0x44] sm:$0xf] %vm1702, %v1641
      %1721 = vst.msk [vmem:[#allocation3 + $0x48] sm:$0xf] %vm1702, %v1643
      %1722 = vst.msk [vmem:[#allocation3 + $0x4c] sm:$0xf] %vm1702, %v1645
      %1723 = vst.msk [vmem:[#allocation3 + $0x50] sm:$0xf] %vm1702, %v1647
      %1724 = vst.msk [vmem:[#allocation3 + $0x54] sm:$0xf] %vm1702, %v1649
      %1725 = vst.msk [vmem:[#allocation3 + $0x58] sm:$0xf] %vm1702, %v1651
      %1726 = vst.msk [vmem:[#allocation3 + $0x5c] sm:$0xf] %vm1702, %v1653
      %1727 = vst.msk [vmem:[#allocation3 + $0x60] sm:$0xf] %vm1702, %v1655
      %1728 = vst.msk [vmem:[#allocation3 + $0x64] sm:$0xf] %vm1702, %v1657
      %1729 = vst.msk [vmem:[#allocation3 + $0x68] sm:$0xf] %vm1702, %v1659
      %1730 = vst.msk [vmem:[#allocation3 + $0x6c] sm:$0xf] %vm1702, %v1661
      %1731 = vst.msk [vmem:[#allocation3 + $0x70] sm:$0xf] %vm1702, %v1663
      %1732 = vst.msk [vmem:[#allocation3 + $0x74] sm:$0xf] %vm1702, %v1665
      %1733 = vst.msk [vmem:[#allocation3 + $0x78] sm:$0xf] %vm1702, %v1667
      %1734 = vst.msk [vmem:[#allocation3 + $0x7c] sm:$0xf] %vm1702, %v1669
      %v1735 = vrot.slane %v698, 2
      %v1736 = vrot.slane %v699, 2
      %v1737 = vsel %vm1123, %v1735, %v1736
      %v1738 = vrot.slane %v700, 2
      %v1739 = vsel %vm1123, %v1736, %v1738
      %v1742 = vpack.c.bf16 %v1737, %v1737
      %v1743 = vpack.c.bf16 %v1739, %v1739
      %1746 = vrot.lane.b32.xlu0 %v1238, 40
      %v1747 = vpop.permute.xlu0 %1746
      %1748 = vrot.lane.b32.xlu0 %v1239, 40
      %v1749 = vpop.permute.xlu0 %1748
      %1750 = vrot.lane.b32.xlu0 %v1240, 40
      %v1751 = vpop.permute.xlu0 %1750
      %1752 = vrot.lane.b32.xlu0 %v1241, 40
      %v1753 = vpop.permute.xlu0 %1752
      %1754 = vrot.lane.b32.xlu0 %v1242, 40
      %v1755 = vpop.permute.xlu0 %1754
      %1756 = vrot.lane.b32.xlu0 %v1243, 40
      %v1757 = vpop.permute.xlu0 %1756
      %1758 = vrot.lane.b32.xlu0 %v1244, 40
      %v1759 = vpop.permute.xlu0 %1758
      %1760 = vrot.lane.b32.xlu0 %v1245, 40
      %v1761 = vpop.permute.xlu0 %1760
      %1762 = vrot.lane.b32.xlu0 %v1246, 40
      %v1763 = vpop.permute.xlu0 %1762
      %1764 = vrot.lane.b32.xlu0 %v1247, 40
      %v1765 = vpop.permute.xlu0 %1764
      %1766 = vrot.lane.b32.xlu0 %v1248, 40
      %v1767 = vpop.permute.xlu0 %1766
      %1768 = vrot.lane.b32.xlu0 %v1249, 40
      %v1769 = vpop.permute.xlu0 %1768
      %1770 = vrot.lane.b32.xlu0 %v1250, 40
      %v1771 = vpop.permute.xlu0 %1770
      %1772 = vrot.lane.b32.xlu0 %v1251, 40
      %v1773 = vpop.permute.xlu0 %1772
      %1774 = vrot.lane.b32.xlu0 %v1252, 40
      %v1775 = vpop.permute.xlu0 %1774
      %1776 = vrot.lane.b32.xlu0 %v1253, 40
      %v1777 = vpop.permute.xlu0 %1776
      %1778 = vrot.lane.b32.xlu0 %v1254, 40
      %v1779 = vpop.permute.xlu0 %1778
      %1780 = vrot.lane.b32.xlu0 %v1255, 40
      %v1781 = vpop.permute.xlu0 %1780
      %1782 = vrot.lane.b32.xlu0 %v1256, 40
      %v1783 = vpop.permute.xlu0 %1782
      %1784 = vrot.lane.b32.xlu0 %v1257, 40
      %v1785 = vpop.permute.xlu0 %1784
      %1786 = vrot.lane.b32.xlu0 %v1258, 40
      %v1787 = vpop.permute.xlu0 %1786
      %1788 = vrot.lane.b32.xlu0 %v1259, 40
      %v1789 = vpop.permute.xlu0 %1788
      %1790 = vrot.lane.b32.xlu0 %v1260, 40
      %v1791 = vpop.permute.xlu0 %1790
      %1792 = vrot.lane.b32.xlu0 %v1261, 40
      %v1793 = vpop.permute.xlu0 %1792
      %1794 = vrot.lane.b32.xlu0 %v1262, 40
      %v1795 = vpop.permute.xlu0 %1794
      %1796 = vrot.lane.b32.xlu0 %v1263, 40
      %v1797 = vpop.permute.xlu0 %1796
      %1798 = vrot.lane.b32.xlu0 %v1264, 40
      %v1799 = vpop.permute.xlu0 %1798
      %1800 = vrot.lane.b32.xlu0 %v1265, 40
      %v1801 = vpop.permute.xlu0 %1800
      %1802 = vrot.lane.b32.xlu0 %v1266, 40
      %v1803 = vpop.permute.xlu0 %1802
      %1804 = vrot.lane.b32.xlu0 %v1267, 40
      %v1805 = vpop.permute.xlu0 %1804
      %1806 = vrot.lane.b32.xlu0 %v1742, 40
      %v1807 = vpop.permute.xlu0 %1806
      %1808 = vrot.lane.b32.xlu0 %v1743, 40
      %v1809 = vpop.permute.xlu0 %1808
      %vm1842 = vcmask 388416
      %1843 = vst.msk [vmem:[#allocation3] sm:$0xf] %vm1842, %v1747
      %1844 = vst.msk [vmem:[#allocation3 + $0x4] sm:$0xf] %vm1842, %v1749
      %1845 = vst.msk [vmem:[#allocation3 + $0x8] sm:$0xf] %vm1842, %v1751
      %1846 = vst.msk [vmem:[#allocation3 + $0xc] sm:$0xf] %vm1842, %v1753
      %1847 = vst.msk [vmem:[#allocation3 + $0x10] sm:$0xf] %vm1842, %v1755
      %1848 = vst.msk [vmem:[#allocation3 + $0x14] sm:$0xf] %vm1842, %v1757
      %1849 = vst.msk [vmem:[#allocation3 + $0x18] sm:$0xf] %vm1842, %v1759
      %1850 = vst.msk [vmem:[#allocation3 + $0x1c] sm:$0xf] %vm1842, %v1761
      %1851 = vst.msk [vmem:[#allocation3 + $0x20] sm:$0xf] %vm1842, %v1763
      %1852 = vst.msk [vmem:[#allocation3 + $0x24] sm:$0xf] %vm1842, %v1765
      %1853 = vst.msk [vmem:[#allocation3 + $0x28] sm:$0xf] %vm1842, %v1767
      %1854 = vst.msk [vmem:[#allocation3 + $0x2c] sm:$0xf] %vm1842, %v1769
      %1855 = vst.msk [vmem:[#allocation3 + $0x30] sm:$0xf] %vm1842, %v1771
      %1856 = vst.msk [vmem:[#allocation3 + $0x34] sm:$0xf] %vm1842, %v1773
      %1857 = vst.msk [vmem:[#allocation3 + $0x38] sm:$0xf] %vm1842, %v1775
      %1858 = vst.msk [vmem:[#allocation3 + $0x3c] sm:$0xf] %vm1842, %v1777
      %1859 = vst.msk [vmem:[#allocation3 + $0x40] sm:$0xf] %vm1842, %v1779
      %1860 = vst.msk [vmem:[#allocation3 + $0x44] sm:$0xf] %vm1842, %v1781
      %1861 = vst.msk [vmem:[#allocation3 + $0x48] sm:$0xf] %vm1842, %v1783
      %1862 = vst.msk [vmem:[#allocation3 + $0x4c] sm:$0xf] %vm1842, %v1785
      %1863 = vst.msk [vmem:[#allocation3 + $0x50] sm:$0xf] %vm1842, %v1787
      %1864 = vst.msk [vmem:[#allocation3 + $0x54] sm:$0xf] %vm1842, %v1789
      %1865 = vst.msk [vmem:[#allocation3 + $0x58] sm:$0xf] %vm1842, %v1791
      %1866 = vst.msk [vmem:[#allocation3 + $0x5c] sm:$0xf] %vm1842, %v1793
      %1867 = vst.msk [vmem:[#allocation3 + $0x60] sm:$0xf] %vm1842, %v1795
      %1868 = vst.msk [vmem:[#allocation3 + $0x64] sm:$0xf] %vm1842, %v1797
      %1869 = vst.msk [vmem:[#allocation3 + $0x68] sm:$0xf] %vm1842, %v1799
      %1870 = vst.msk [vmem:[#allocation3 + $0x6c] sm:$0xf] %vm1842, %v1801
      %1871 = vst.msk [vmem:[#allocation3 + $0x70] sm:$0xf] %vm1842, %v1803
      %1872 = vst.msk [vmem:[#allocation3 + $0x74] sm:$0xf] %vm1842, %v1805
      %1873 = vst.msk [vmem:[#allocation3 + $0x78] sm:$0xf] %vm1842, %v1807
      %1874 = vst.msk [vmem:[#allocation3 + $0x7c] sm:$0xf] %vm1842, %v1809
      %v1875 = vpack.c.bf16 %v701, %v701
      %v1876 = vpack.c.bf16 %v702, %v702
      %1879 = vrot.lane.b32.xlu0 %v708, 48
      %v1880 = vpop.permute.xlu0 %1879
      %1881 = vrot.lane.b32.xlu0 %v709, 48
      %v1882 = vpop.permute.xlu0 %1881
      %1883 = vrot.lane.b32.xlu0 %v710, 48
      %v1884 = vpop.permute.xlu0 %1883
      %1885 = vrot.lane.b32.xlu0 %v711, 48
      %v1886 = vpop.permute.xlu0 %1885
      %1887 = vrot.lane.b32.xlu0 %v712, 48
      %v1888 = vpop.permute.xlu0 %1887
      %1889 = vrot.lane.b32.xlu0 %v713, 48
      %v1890 = vpop.permute.xlu0 %1889
      %1891 = vrot.lane.b32.xlu0 %v714, 48
      %v1892 = vpop.permute.xlu0 %1891
      %1893 = vrot.lane.b32.xlu0 %v715, 48
      %v1894 = vpop.permute.xlu0 %1893
      %1895 = vrot.lane.b32.xlu0 %v716, 48
      %v1896 = vpop.permute.xlu0 %1895
      %1897 = vrot.lane.b32.xlu0 %v717, 48
      %v1898 = vpop.permute.xlu0 %1897
      %1899 = vrot.lane.b32.xlu0 %v718, 48
      %v1900 = vpop.permute.xlu0 %1899
      %1901 = vrot.lane.b32.xlu0 %v719, 48
      %v1902 = vpop.permute.xlu0 %1901
      %1903 = vrot.lane.b32.xlu0 %v720, 48
      %v1904 = vpop.permute.xlu0 %1903
      %1905 = vrot.lane.b32.xlu0 %v721, 48
      %v1906 = vpop.permute.xlu0 %1905
      %1907 = vrot.lane.b32.xlu0 %v722, 48
      %v1908 = vpop.permute.xlu0 %1907
      %1909 = vrot.lane.b32.xlu0 %v723, 48
      %v1910 = vpop.permute.xlu0 %1909
      %1911 = vrot.lane.b32.xlu0 %v724, 48
      %v1912 = vpop.permute.xlu0 %1911
      %1913 = vrot.lane.b32.xlu0 %v725, 48
      %v1914 = vpop.permute.xlu0 %1913
      %1915 = vrot.lane.b32.xlu0 %v726, 48
      %v1916 = vpop.permute.xlu0 %1915
      %1917 = vrot.lane.b32.xlu0 %v727, 48
      %v1918 = vpop.permute.xlu0 %1917
      %1919 = vrot.lane.b32.xlu0 %v728, 48
      %v1920 = vpop.permute.xlu0 %1919
      %1921 = vrot.lane.b32.xlu0 %v729, 48
      %v1922 = vpop.permute.xlu0 %1921
      %1923 = vrot.lane.b32.xlu0 %v730, 48
      %v1924 = vpop.permute.xlu0 %1923
      %1925 = vrot.lane.b32.xlu0 %v731, 48
      %v1926 = vpop.permute.xlu0 %1925
      %1927 = vrot.lane.b32.xlu0 %v732, 48
      %v1928 = vpop.permute.xlu0 %1927
      %1929 = vrot.lane.b32.xlu0 %v733, 48
      %v1930 = vpop.permute.xlu0 %1929
      %1931 = vrot.lane.b32.xlu0 %v734, 48
      %v1932 = vpop.permute.xlu0 %1931
      %1933 = vrot.lane.b32.xlu0 %v735, 48
      %v1934 = vpop.permute.xlu0 %1933
      %1935 = vrot.lane.b32.xlu0 %v1429, 48
      %v1936 = vpop.permute.xlu0 %1935
      %1937 = vrot.lane.b32.xlu0 %v1430, 48
      %v1938 = vpop.permute.xlu0 %1937
      %1939 = vrot.lane.b32.xlu0 %v1875, 48
      %v1940 = vpop.permute.xlu0 %1939
      %1941 = vrot.lane.b32.xlu0 %v1876, 48
      %v1942 = vpop.permute.xlu0 %1941
      %vm1975 = vcmask 454016
      %1976 = vst.msk [vmem:[#allocation3] sm:$0xf] %vm1975, %v1880
      %1977 = vst.msk [vmem:[#allocation3 + $0x4] sm:$0xf] %vm1975, %v1882
      %1978 = vst.msk [vmem:[#allocation3 + $0x8] sm:$0xf] %vm1975, %v1884
      %1979 = vst.msk [vmem:[#allocation3 + $0xc] sm:$0xf] %vm1975, %v1886
      %1980 = vst.msk [vmem:[#allocation3 + $0x10] sm:$0xf] %vm1975, %v1888
      %1981 = vst.msk [vmem:[#allocation3 + $0x14] sm:$0xf] %vm1975, %v1890
      %1982 = vst.msk [vmem:[#allocation3 + $0x18] sm:$0xf] %vm1975, %v1892
      %1983 = vst.msk [vmem:[#allocation3 + $0x1c] sm:$0xf] %vm1975, %v1894
      %1984 = vst.msk [vmem:[#allocation3 + $0x20] sm:$0xf] %vm1975, %v1896
      %1985 = vst.msk [vmem:[#allocation3 + $0x24] sm:$0xf] %vm1975, %v1898
      %1986 = vst.msk [vmem:[#allocation3 + $0x28] sm:$0xf] %vm1975, %v1900
      %1987 = vst.msk [vmem:[#allocation3 + $0x2c] sm:$0xf] %vm1975, %v1902
      %1988 = vst.msk [vmem:[#allocation3 + $0x30] sm:$0xf] %vm1975, %v1904
      %1989 = vst.msk [vmem:[#allocation3 + $0x34] sm:$0xf] %vm1975, %v1906
      %1990 = vst.msk [vmem:[#allocation3 + $0x38] sm:$0xf] %vm1975, %v1908
      %1991 = vst.msk [vmem:[#allocation3 + $0x3c] sm:$0xf] %vm1975, %v1910
      %1992 = vst.msk [vmem:[#allocation3 + $0x40] sm:$0xf] %vm1975, %v1912
      %1993 = vst.msk [vmem:[#allocation3 + $0x44] sm:$0xf] %vm1975, %v1914
      %1994 = vst.msk [vmem:[#allocation3 + $0x48] sm:$0xf] %vm1975, %v1916
      %1995 = vst.msk [vmem:[#allocation3 + $0x4c] sm:$0xf] %vm1975, %v1918
      %1996 = vst.msk [vmem:[#allocation3 + $0x50] sm:$0xf] %vm1975, %v1920
      %1997 = vst.msk [vmem:[#allocation3 + $0x54] sm:$0xf] %vm1975, %v1922
      %1998 = vst.msk [vmem:[#allocation3 + $0x58] sm:$0xf] %vm1975, %v1924
      %1999 = vst.msk [vmem:[#allocation3 + $0x5c] sm:$0xf] %vm1975, %v1926
      %2000 = vst.msk [vmem:[#allocation3 + $0x60] sm:$0xf] %vm1975, %v1928
      %2001 = vst.msk [vmem:[#allocation3 + $0x64] sm:$0xf] %vm1975, %v1930
      %2002 = vst.msk [vmem:[#allocation3 + $0x68] sm:$0xf] %vm1975, %v1932
      %2003 = vst.msk [vmem:[#allocation3 + $0x6c] sm:$0xf] %vm1975, %v1934
      %2004 = vst.msk [vmem:[#allocation3 + $0x70] sm:$0xf] %vm1975, %v1936
      %2005 = vst.msk [vmem:[#allocation3 + $0x74] sm:$0xf] %vm1975, %v1938
      %2006 = vst.msk [vmem:[#allocation3 + $0x78] sm:$0xf] %vm1975, %v1940
      %2007 = vst.msk [vmem:[#allocation3 + $0x7c] sm:$0xf] %vm1975, %v1942
      %v2011 = vrot.slane %v701, 1
      %v2012 = vrot.slane %v702, 1
      %v2013 = vsel %vm817, %v2011, %v2012
      %v2014 = vrot.slane %v703, 1
      %v2015 = vsel %vm817, %v2012, %v2014
      %v2018 = vpack.c.bf16 %v2013, %v2013
      %v2019 = vpack.c.bf16 %v2015, %v2015
      %2022 = vrot.lane.b32.xlu0 %v934, 56
      %v2023 = vpop.permute.xlu0 %2022
      %2024 = vrot.lane.b32.xlu0 %v935, 56
      %v2025 = vpop.permute.xlu0 %2024
      %2026 = vrot.lane.b32.xlu0 %v936, 56
      %v2027 = vpop.permute.xlu0 %2026
      %2028 = vrot.lane.b32.xlu0 %v937, 56
      %v2029 = vpop.permute.xlu0 %2028
      %2030 = vrot.lane.b32.xlu0 %v938, 56
      %v2031 = vpop.permute.xlu0 %2030
      %2032 = vrot.lane.b32.xlu0 %v939, 56
      %v2033 = vpop.permute.xlu0 %2032
      %2034 = vrot.lane.b32.xlu0 %v940, 56
      %v2035 = vpop.permute.xlu0 %2034
      %2036 = vrot.lane.b32.xlu0 %v941, 56
      %v2037 = vpop.permute.xlu0 %2036
      %2038 = vrot.lane.b32.xlu0 %v942, 56
      %v2039 = vpop.permute.xlu0 %2038
      %2040 = vrot.lane.b32.xlu0 %v943, 56
      %v2041 = vpop.permute.xlu0 %2040
      %2042 = vrot.lane.b32.xlu0 %v944, 56
      %v2043 = vpop.permute.xlu0 %2042
      %2044 = vrot.lane.b32.xlu0 %v945, 56
      %v2045 = vpop.permute.xlu0 %2044
      %2046 = vrot.lane.b32.xlu0 %v946, 56
      %v2047 = vpop.permute.xlu0 %2046
      %2048 = vrot.lane.b32.xlu0 %v947, 56
      %v2049 = vpop.permute.xlu0 %2048
      %2050 = vrot.lane.b32.xlu0 %v948, 56
      %v2051 = vpop.permute.xlu0 %2050
      %2052 = vrot.lane.b32.xlu0 %v949, 56
      %v2053 = vpop.permute.xlu0 %2052
      %2054 = vrot.lane.b32.xlu0 %v950, 56
      %v2055 = vpop.permute.xlu0 %2054
      %2056 = vrot.lane.b32.xlu0 %v951, 56
      %v2057 = vpop.permute.xlu0 %2056
      %2058 = vrot.lane.b32.xlu0 %v952, 56
      %v2059 = vpop.permute.xlu0 %2058
      %2060 = vrot.lane.b32.xlu0 %v953, 56
      %v2061 = vpop.permute.xlu0 %2060
      %2062 = vrot.lane.b32.xlu0 %v954, 56
      %v2063 = vpop.permute.xlu0 %2062
      %2064 = vrot.lane.b32.xlu0 %v955, 56
      %v2065 = vpop.permute.xlu0 %2064
      %2066 = vrot.lane.b32.xlu0 %v956, 56
      %v2067 = vpop.permute.xlu0 %2066
      %2068 = vrot.lane.b32.xlu0 %v957, 56
      %v2069 = vpop.permute.xlu0 %2068
      %2070 = vrot.lane.b32.xlu0 %v958, 56
      %v2071 = vpop.permute.xlu0 %2070
      %2072 = vrot.lane.b32.xlu0 %v959, 56
      %v2073 = vpop.permute.xlu0 %2072
      %2074 = vrot.lane.b32.xlu0 %v960, 56
      %v2075 = vpop.permute.xlu0 %2074
      %2076 = vrot.lane.b32.xlu0 %v961, 56
      %v2077 = vpop.permute.xlu0 %2076
      %2078 = vrot.lane.b32.xlu0 %v1602, 56
      %v2079 = vpop.permute.xlu0 %2078
      %2080 = vrot.lane.b32.xlu0 %v1603, 56
      %v2081 = vpop.permute.xlu0 %2080
      %2082 = vrot.lane.b32.xlu0 %v2018, 56
      %v2083 = vpop.permute.xlu0 %2082
      %2084 = vrot.lane.b32.xlu0 %v2019, 56
      %v2085 = vpop.permute.xlu0 %2084
      %vm2118 = vcmask 519616
      %2119 = vst.msk [vmem:[#allocation3] sm:$0xf] %vm2118, %v2023
      %2120 = vst.msk [vmem:[#allocation3 + $0x4] sm:$0xf] %vm2118, %v2025
      %2121 = vst.msk [vmem:[#allocation3 + $0x8] sm:$0xf] %vm2118, %v2027
      %2122 = vst.msk [vmem:[#allocation3 + $0xc] sm:$0xf] %vm2118, %v2029
      %2123 = vst.msk [vmem:[#allocation3 + $0x10] sm:$0xf] %vm2118, %v2031
      %2124 = vst.msk [vmem:[#allocation3 + $0x14] sm:$0xf] %vm2118, %v2033
      %2125 = vst.msk [vmem:[#allocation3 + $0x18] sm:$0xf] %vm2118, %v2035
      %2126 = vst.msk [vmem:[#allocation3 + $0x1c] sm:$0xf] %vm2118, %v2037
      %2127 = vst.msk [vmem:[#allocation3 + $0x20] sm:$0xf] %vm2118, %v2039
      %2128 = vst.msk [vmem:[#allocation3 + $0x24] sm:$0xf] %vm2118, %v2041
      %2129 = vst.msk [vmem:[#allocation3 + $0x28] sm:$0xf] %vm2118, %v2043
      %2130 = vst.msk [vmem:[#allocation3 + $0x2c] sm:$0xf] %vm2118, %v2045
      %2131 = vst.msk [vmem:[#allocation3 + $0x30] sm:$0xf] %vm2118, %v2047
      %2132 = vst.msk [vmem:[#allocation3 + $0x34] sm:$0xf] %vm2118, %v2049
      %2133 = vst.msk [vmem:[#allocation3 + $0x38] sm:$0xf] %vm2118, %v2051
      %2134 = vst.msk [vmem:[#allocation3 + $0x3c] sm:$0xf] %vm2118, %v2053
      %2135 = vst.msk [vmem:[#allocation3 + $0x40] sm:$0xf] %vm2118, %v2055
      %2136 = vst.msk [vmem:[#allocation3 + $0x44] sm:$0xf] %vm2118, %v2057
      %2137 = vst.msk [vmem:[#allocation3 + $0x48] sm:$0xf] %vm2118, %v2059
      %2138 = vst.msk [vmem:[#allocation3 + $0x4c] sm:$0xf] %vm2118, %v2061
      %2139 = vst.msk [vmem:[#allocation3 + $0x50] sm:$0xf] %vm2118, %v2063
      %2140 = vst.msk [vmem:[#allocation3 + $0x54] sm:$0xf] %vm2118, %v2065
      %2141 = vst.msk [vmem:[#allocation3 + $0x58] sm:$0xf] %vm2118, %v2067
      %2142 = vst.msk [vmem:[#allocation3 + $0x5c] sm:$0xf] %vm2118, %v2069
      %2143 = vst.msk [vmem:[#allocation3 + $0x60] sm:$0xf] %vm2118, %v2071
      %2144 = vst.msk [vmem:[#allocation3 + $0x64] sm:$0xf] %vm2118, %v2073
      %2145 = vst.msk [vmem:[#allocation3 + $0x68] sm:$0xf] %vm2118, %v2075
      %2146 = vst.msk [vmem:[#allocation3 + $0x6c] sm:$0xf] %vm2118, %v2077
      %2147 = vst.msk [vmem:[#allocation3 + $0x70] sm:$0xf] %vm2118, %v2079
      %2148 = vst.msk [vmem:[#allocation3 + $0x74] sm:$0xf] %vm2118, %v2081
      %2149 = vst.msk [vmem:[#allocation3 + $0x78] sm:$0xf] %vm2118, %v2083
      %2150 = vst.msk [vmem:[#allocation3 + $0x7c] sm:$0xf] %vm2118, %v2085
      %v2151 = vrot.slane %v701, 2
      %v2152 = vrot.slane %v702, 2
      %v2153 = vsel %vm1123, %v2151, %v2152
      %v2154 = vrot.slane %v703, 2
      %v2155 = vsel %vm1123, %v2152, %v2154
      %v2158 = vpack.c.bf16 %v2153, %v2153
      %v2159 = vpack.c.bf16 %v2155, %v2155
      %2162 = vrot.lane.b32.xlu0 %v1240, 64
      %v2163 = vpop.permute.xlu0 %2162
      %2164 = vrot.lane.b32.xlu0 %v1241, 64
      %v2165 = vpop.permute.xlu0 %2164
      %2166 = vrot.lane.b32.xlu0 %v1242, 64
      %v2167 = vpop.permute.xlu0 %2166
      %2168 = vrot.lane.b32.xlu0 %v1243, 64
      %v2169 = vpop.permute.xlu0 %2168
      %2170 = vrot.lane.b32.xlu0 %v1244, 64
      %v2171 = vpop.permute.xlu0 %2170
      %2172 = vrot.lane.b32.xlu0 %v1245, 64
      %v2173 = vpop.permute.xlu0 %2172
      %2174 = vrot.lane.b32.xlu0 %v1246, 64
      %v2175 = vpop.permute.xlu0 %2174
      %2176 = vrot.lane.b32.xlu0 %v1247, 64
      %v2177 = vpop.permute.xlu0 %2176
      %2178 = vrot.lane.b32.xlu0 %v1248, 64
      %v2179 = vpop.permute.xlu0 %2178
      %2180 = vrot.lane.b32.xlu0 %v1249, 64
      %v2181 = vpop.permute.xlu0 %2180
      %2182 = vrot.lane.b32.xlu0 %v1250, 64
      %v2183 = vpop.permute.xlu0 %2182
      %2184 = vrot.lane.b32.xlu0 %v1251, 64
      %v2185 = vpop.permute.xlu0 %2184
      %2186 = vrot.lane.b32.xlu0 %v1252, 64
      %v2187 = vpop.permute.xlu0 %2186
      %2188 = vrot.lane.b32.xlu0 %v1253, 64
      %v2189 = vpop.permute.xlu0 %2188
      %2190 = vrot.lane.b32.xlu0 %v1254, 64
      %v2191 = vpop.permute.xlu0 %2190
      %2192 = vrot.lane.b32.xlu0 %v1255, 64
      %v2193 = vpop.permute.xlu0 %2192
      %2194 = vrot.lane.b32.xlu0 %v1256, 64
      %v2195 = vpop.permute.xlu0 %2194
      %2196 = vrot.lane.b32.xlu0 %v1257, 64
      %v2197 = vpop.permute.xlu0 %2196
      %2198 = vrot.lane.b32.xlu0 %v1258, 64
      %v2199 = vpop.permute.xlu0 %2198
      %2200 = vrot.lane.b32.xlu0 %v1259, 64
      %v2201 = vpop.permute.xlu0 %2200
      %2202 = vrot.lane.b32.xlu0 %v1260, 64
      %v2203 = vpop.permute.xlu0 %2202
      %2204 = vrot.lane.b32.xlu0 %v1261, 64
      %v2205 = vpop.permute.xlu0 %2204
      %2206 = vrot.lane.b32.xlu0 %v1262, 64
      %v2207 = vpop.permute.xlu0 %2206
      %2208 = vrot.lane.b32.xlu0 %v1263, 64
      %v2209 = vpop.permute.xlu0 %2208
      %2210 = vrot.lane.b32.xlu0 %v1264, 64
      %v2211 = vpop.permute.xlu0 %2210
      %2212 = vrot.lane.b32.xlu0 %v1265, 64
      %v2213 = vpop.permute.xlu0 %2212
      %2214 = vrot.lane.b32.xlu0 %v1266, 64
      %v2215 = vpop.permute.xlu0 %2214
      %2216 = vrot.lane.b32.xlu0 %v1267, 64
      %v2217 = vpop.permute.xlu0 %2216
      %2218 = vrot.lane.b32.xlu0 %v1742, 64
      %v2219 = vpop.permute.xlu0 %2218
      %2220 = vrot.lane.b32.xlu0 %v1743, 64
      %v2221 = vpop.permute.xlu0 %2220
      %2222 = vrot.lane.b32.xlu0 %v2158, 64
      %v2223 = vpop.permute.xlu0 %2222
      %2224 = vrot.lane.b32.xlu0 %v2159, 64
      %v2225 = vpop.permute.xlu0 %2224
      %vm2258 = vcmask 585216
      %2259 = vst.msk [vmem:[#allocation3] sm:$0xf] %vm2258, %v2163
      %2260 = vst.msk [vmem:[#allocation3 + $0x4] sm:$0xf] %vm2258, %v2165
      %2261 = vst.msk [vmem:[#allocation3 + $0x8] sm:$0xf] %vm2258, %v2167
      %2262 = vst.msk [vmem:[#allocation3 + $0xc] sm:$0xf] %vm2258, %v2169
      %2263 = vst.msk [vmem:[#allocation3 + $0x10] sm:$0xf] %vm2258, %v2171
      %2264 = vst.msk [vmem:[#allocation3 + $0x14] sm:$0xf] %vm2258, %v2173
      %2265 = vst.msk [vmem:[#allocation3 + $0x18] sm:$0xf] %vm2258, %v2175
      %2266 = vst.msk [vmem:[#allocation3 + $0x1c] sm:$0xf] %vm2258, %v2177
      %2267 = vst.msk [vmem:[#allocation3 + $0x20] sm:$0xf] %vm2258, %v2179
      %2268 = vst.msk [vmem:[#allocation3 + $0x24] sm:$0xf] %vm2258, %v2181
      %2269 = vst.msk [vmem:[#allocation3 + $0x28] sm:$0xf] %vm2258, %v2183
      %2270 = vst.msk [vmem:[#allocation3 + $0x2c] sm:$0xf] %vm2258, %v2185
      %2271 = vst.msk [vmem:[#allocation3 + $0x30] sm:$0xf] %vm2258, %v2187
      %2272 = vst.msk [vmem:[#allocation3 + $0x34] sm:$0xf] %vm2258, %v2189
      %2273 = vst.msk [vmem:[#allocation3 + $0x38] sm:$0xf] %vm2258, %v2191
      %2274 = vst.msk [vmem:[#allocation3 + $0x3c] sm:$0xf] %vm2258, %v2193
      %2275 = vst.msk [vmem:[#allocation3 + $0x40] sm:$0xf] %vm2258, %v2195
      %2276 = vst.msk [vmem:[#allocation3 + $0x44] sm:$0xf] %vm2258, %v2197
      %2277 = vst.msk [vmem:[#allocation3 + $0x48] sm:$0xf] %vm2258, %v2199
      %2278 = vst.msk [vmem:[#allocation3 + $0x4c] sm:$0xf] %vm2258, %v2201
      %2279 = vst.msk [vmem:[#allocation3 + $0x50] sm:$0xf] %vm2258, %v2203
      %2280 = vst.msk [vmem:[#allocation3 + $0x54] sm:$0xf] %vm2258, %v2205
      %2281 = vst.msk [vmem:[#allocation3 + $0x58] sm:$0xf] %vm2258, %v2207
      %2282 = vst.msk [vmem:[#allocation3 + $0x5c] sm:$0xf] %vm2258, %v2209
      %2283 = vst.msk [vmem:[#allocation3 + $0x60] sm:$0xf] %vm2258, %v2211
      %2284 = vst.msk [vmem:[#allocation3 + $0x64] sm:$0xf] %vm2258, %v2213
      %2285 = vst.msk [vmem:[#allocation3 + $0x68] sm:$0xf] %vm2258, %v2215
      %2286 = vst.msk [vmem:[#allocation3 + $0x6c] sm:$0xf] %vm2258, %v2217
      %2287 = vst.msk [vmem:[#allocation3 + $0x70] sm:$0xf] %vm2258, %v2219
      %2288 = vst.msk [vmem:[#allocation3 + $0x74] sm:$0xf] %vm2258, %v2221
      %2289 = vst.msk [vmem:[#allocation3 + $0x78] sm:$0xf] %vm2258, %v2223
      %2290 = vst.msk [vmem:[#allocation3 + $0x7c] sm:$0xf] %vm2258, %v2225
      %v2291 = vld [vmem:[#allocation3] sm:$0xf]
      %v2292 = vld [vmem:[#allocation3 + $0x4] sm:$0xf]
      %v2293 = vld [vmem:[#allocation3 + $0x8] sm:$0xf]
      %v2294 = vld [vmem:[#allocation3 + $0xc] sm:$0xf]
      %v2295 = vld [vmem:[#allocation3 + $0x10] sm:$0xf]
      %v2296 = vld [vmem:[#allocation3 + $0x14] sm:$0xf]
      %v2297 = vld [vmem:[#allocation3 + $0x18] sm:$0xf]
      %v2298 = vld [vmem:[#allocation3 + $0x1c] sm:$0xf]
      %v2299 = vld [vmem:[#allocation3 + $0x20] sm:$0xf]
      %v2300 = vld [vmem:[#allocation3 + $0x24] sm:$0xf]
      %v2301 = vld [vmem:[#allocation3 + $0x28] sm:$0xf]
      %v2302 = vld [vmem:[#allocation3 + $0x2c] sm:$0xf]
      %v2303 = vld [vmem:[#allocation3 + $0x30] sm:$0xf]
      %v2304 = vld [vmem:[#allocation3 + $0x34] sm:$0xf]
      %v2305 = vld [vmem:[#allocation3 + $0x38] sm:$0xf]
      %v2306 = vld [vmem:[#allocation3 + $0x3c] sm:$0xf]
      %v2307 = vld [vmem:[#allocation3 + $0x40] sm:$0xf]
      %v2308 = vld [vmem:[#allocation3 + $0x44] sm:$0xf]
      %v2309 = vld [vmem:[#allocation3 + $0x48] sm:$0xf]
      %v2310 = vld [vmem:[#allocation3 + $0x4c] sm:$0xf]
      %v2311 = vld [vmem:[#allocation3 + $0x50] sm:$0xf]
      %v2312 = vld [vmem:[#allocation3 + $0x54] sm:$0xf]
      %v2313 = vld [vmem:[#allocation3 + $0x58] sm:$0xf]
      %v2314 = vld [vmem:[#allocation3 + $0x5c] sm:$0xf]
      %v2315 = vld [vmem:[#allocation3 + $0x60] sm:$0xf]
      %v2316 = vld [vmem:[#allocation3 + $0x64] sm:$0xf]
      %v2317 = vld [vmem:[#allocation3 + $0x68] sm:$0xf]
      %v2318 = vld [vmem:[#allocation3 + $0x6c] sm:$0xf]
      %v2319 = vld [vmem:[#allocation3 + $0x70] sm:$0xf]
      %v2320 = vld [vmem:[#allocation3 + $0x74] sm:$0xf]
      %v2321 = vld [vmem:[#allocation3 + $0x78] sm:$0xf]
      %v2322 = vld [vmem:[#allocation3 + $0x7c] sm:$0xf]
      %v2323 = vld [vmem:[%s2] sm:$0xf]
      %v2324 = vld [vmem:[%s2 + $0x4] sm:$0xf]
      %v2325 = vld [vmem:[%s2 + $0x8] sm:$0xf]
      %v2326 = vld [vmem:[%s2 + $0xc] sm:$0xf]
      %v2327 = vld [vmem:[%s2 + $0x10] sm:$0xf]
      %v2328 = vld [vmem:[%s2 + $0x14] sm:$0xf]
      %v2329 = vld [vmem:[%s2 + $0x18] sm:$0xf]
      %v2330 = vld [vmem:[%s2 + $0x1c] sm:$0xf]
      %v2331 = vld [vmem:[%s2 + $0x20] sm:$0xf]
      %v2332 = vld [vmem:[%s5] sm:$0x1]
      %v2334 = vperm.slane %v2332, 0
      %v2368 = vunpack.c.l.b16 %v2291
      %v2369 = vunpack.c.l.b16 %v2292
      %v2370 = vunpack.c.l.b16 %v2293
      %v2371 = vunpack.c.l.b16 %v2294
      %v2372 = vunpack.c.l.b16 %v2295
      %v2373 = vunpack.c.l.b16 %v2296
      %v2374 = vunpack.c.l.b16 %v2297
      %v2375 = vunpack.c.l.b16 %v2298
      %v2376 = vunpack.c.l.b16 %v2299
      %v2377 = vunpack.c.l.b16 %v2300
      %v2378 = vunpack.c.l.b16 %v2301
      %v2379 = vunpack.c.l.b16 %v2302
      %v2380 = vunpack.c.l.b16 %v2303
      %v2381 = vunpack.c.l.b16 %v2304
      %v2382 = vunpack.c.l.b16 %v2305
      %v2383 = vunpack.c.l.b16 %v2306
      %v2384 = vunpack.c.l.b16 %v2307
      %v2385 = vunpack.c.l.b16 %v2308
      %v2386 = vunpack.c.l.b16 %v2309
      %v2387 = vunpack.c.l.b16 %v2310
      %v2388 = vunpack.c.l.b16 %v2311
      %v2389 = vunpack.c.l.b16 %v2312
      %v2390 = vunpack.c.l.b16 %v2313
      %v2391 = vunpack.c.l.b16 %v2314
      %v2392 = vunpack.c.l.b16 %v2315
      %v2393 = vunpack.c.l.b16 %v2316
      %v2394 = vunpack.c.l.b16 %v2317
      %v2395 = vunpack.c.l.b16 %v2318
      %v2396 = vunpack.c.l.b16 %v2319
      %v2397 = vunpack.c.l.b16 %v2320
      %v2398 = vunpack.c.l.b16 %v2321
      %v2399 = vunpack.c.l.b16 %v2322
      %v2400 = vpack.c.b16 %v2369, %v2368
      %v2401 = vpack.c.b16 %v2371, %v2370
      %v2402 = vpack.c.b16 %v2373, %v2372
      %v2403 = vpack.c.b16 %v2375, %v2374
      %v2404 = vpack.c.b16 %v2377, %v2376
      %v2405 = vpack.c.b16 %v2379, %v2378
      %v2406 = vpack.c.b16 %v2381, %v2380
      %v2407 = vpack.c.b16 %v2383, %v2382
      %v2408 = vpack.c.b16 %v2385, %v2384
      %v2409 = vpack.c.b16 %v2387, %v2386
      %v2410 = vpack.c.b16 %v2389, %v2388
      %v2411 = vpack.c.b16 %v2391, %v2390
      %v2412 = vpack.c.b16 %v2393, %v2392
      %v2413 = vpack.c.b16 %v2395, %v2394
      %v2414 = vpack.c.b16 %v2397, %v2396
      %v2415 = vpack.c.b16 %v2399, %v2398
      %v2425 = vunpack.c.l.b16 %v2323
      %v2426 = vunpack.c.l.b16 %v2324
      %v2427 = vunpack.c.l.b16 %v2325
      %v2428 = vunpack.c.l.b16 %v2326
      %v2429 = vunpack.c.l.b16 %v2327
      %v2430 = vunpack.c.l.b16 %v2328
      %v2431 = vunpack.c.l.b16 %v2329
      %v2432 = vunpack.c.l.b16 %v2330
      %v2433 = vunpack.c.l.b16 %v2331
      %v2434 = vpack.c.b16 %v2426, %v2425
      %v2435 = vpack.c.b16 %v2428, %v2427
      %v2436 = vpack.c.b16 %v2430, %v2429
      %v2437 = vpack.c.b16 %v2432, %v2431
      %v2438 = vpack.c.b16 %v2433, %v2433
      %vm2443 = vcmask 588800
      %v2445 = vsel %vm2443, %v2400, 0
      %v2448 = vsel %vm2443, %v2401, 0
      %v2451 = vsel %vm2443, %v2402, 0
      %v2454 = vsel %vm2443, %v2403, 0
      %v2457 = vsel %vm2443, %v2404, 0
      %v2460 = vsel %vm2443, %v2405, 0
      %v2463 = vsel %vm2443, %v2406, 0
      %v2466 = vsel %vm2443, %v2407, 0
      %v2469 = vsel %vm2443, %v2408, 0
      %v2472 = vsel %vm2443, %v2409, 0
      %v2475 = vsel %vm2443, %v2410, 0
      %v2478 = vsel %vm2443, %v2411, 0
      %v2481 = vsel %vm2443, %v2412, 0
      %v2484 = vsel %vm2443, %v2413, 0
      %v2487 = vsel %vm2443, %v2414, 0
      %v2490 = vsel %vm2443, %v2415, 0
      %vm2492 = vcmask 1043456
      %v2494 = vsel %vm2492, %v2438, 0
      %2496 = vmatpush.bf16.msra.mxu0 0
      %2497 = vmatpush.bf16.msra.mxu0 0
      %2498 = vmatpush.bf16.msra.mxu0 0
      %2499 = vmatpush.bf16.msra.mxu0 %v2494
      %2500 = vmatpush.bf16.msra.mxu0 %v2437
      %2501 = vmatpush.bf16.msra.mxu0 %v2436
      %2502 = vmatpush.bf16.msra.mxu0 %v2435
      %2503 = vmatpush.bf16.msra.mxu0 %v2434
      %2504 = vmatmul.bf16.gmra.mxu0 %v2445
      %v2505 = vpop.f32.mrf.mxu0
      %v2506 = vadd.f32 %v2334, %v2505
      %v2507 = vpop.f32.mrf.mxu0
      %v2508 = vadd.f32 %v2334, %v2507
      %2509 = vmatmul.bf16.gmra.mxu0 %v2448
      %v2510 = vpop.f32.mrf.mxu0
      %v2511 = vadd.f32 %v2334, %v2510
      %v2512 = vpop.f32.mrf.mxu0
      %v2513 = vadd.f32 %v2334, %v2512
      %2514 = vmatmul.bf16.gmra.mxu0 %v2451
      %v2515 = vpop.f32.mrf.mxu0
      %v2516 = vadd.f32 %v2334, %v2515
      %v2517 = vpop.f32.mrf.mxu0
      %v2518 = vadd.f32 %v2334, %v2517
      %2519 = vmatmul.bf16.gmra.mxu0 %v2454
      %v2520 = vpop.f32.mrf.mxu0
      %v2521 = vadd.f32 %v2334, %v2520
      %v2522 = vpop.f32.mrf.mxu0
      %v2523 = vadd.f32 %v2334, %v2522
      %2524 = vmatmul.bf16.gmra.mxu0 %v2457
      %v2525 = vpop.f32.mrf.mxu0
      %v2526 = vadd.f32 %v2334, %v2525
      %v2527 = vpop.f32.mrf.mxu0
      %v2528 = vadd.f32 %v2334, %v2527
      %2529 = vmatmul.bf16.gmra.mxu0 %v2460
      %v2530 = vpop.f32.mrf.mxu0
      %v2531 = vadd.f32 %v2334, %v2530
      %v2532 = vpop.f32.mrf.mxu0
      %v2533 = vadd.f32 %v2334, %v2532
      %2534 = vmatmul.bf16.gmra.mxu0 %v2463
      %v2535 = vpop.f32.mrf.mxu0
      %v2536 = vadd.f32 %v2334, %v2535
      %v2537 = vpop.f32.mrf.mxu0
      %v2538 = vadd.f32 %v2334, %v2537
      %2539 = vmatmul.bf16.gmra.mxu0 %v2466
      %v2540 = vpop.f32.mrf.mxu0
      %v2541 = vadd.f32 %v2334, %v2540
      %v2542 = vpop.f32.mrf.mxu0
      %v2543 = vadd.f32 %v2334, %v2542
      %2544 = vmatmul.bf16.gmra.mxu0 %v2469
      %v2545 = vpop.f32.mrf.mxu0
      %v2546 = vadd.f32 %v2334, %v2545
      %v2547 = vpop.f32.mrf.mxu0
      %v2548 = vadd.f32 %v2334, %v2547
      %2549 = vmatmul.bf16.gmra.mxu0 %v2472
      %v2550 = vpop.f32.mrf.mxu0
      %v2551 = vadd.f32 %v2334, %v2550
      %v2552 = vpop.f32.mrf.mxu0
      %v2553 = vadd.f32 %v2334, %v2552
      %2554 = vmatmul.bf16.gmra.mxu0 %v2475
      %v2555 = vpop.f32.mrf.mxu0
      %v2556 = vadd.f32 %v2334, %v2555
      %v2557 = vpop.f32.mrf.mxu0
      %v2558 = vadd.f32 %v2334, %v2557
      %2559 = vmatmul.bf16.gmra.mxu0 %v2478
      %v2560 = vpop.f32.mrf.mxu0
      %v2561 = vadd.f32 %v2334, %v2560
      %v2562 = vpop.f32.mrf.mxu0
      %v2563 = vadd.f32 %v2334, %v2562
      %2564 = vmatmul.bf16.gmra.mxu0 %v2481
      %v2565 = vpop.f32.mrf.mxu0
      %v2566 = vadd.f32 %v2334, %v2565
      %v2567 = vpop.f32.mrf.mxu0
      %v2568 = vadd.f32 %v2334, %v2567
      %2569 = vmatmul.bf16.gmra.mxu0 %v2484
      %v2570 = vpop.f32.mrf.mxu0
      %v2571 = vadd.f32 %v2334, %v2570
      %v2572 = vpop.f32.mrf.mxu0
      %v2573 = vadd.f32 %v2334, %v2572
      %2574 = vmatmul.bf16.gmra.mxu0 %v2487
      %v2575 = vpop.f32.mrf.mxu0
      %v2576 = vadd.f32 %v2334, %v2575
      %v2577 = vpop.f32.mrf.mxu0
      %v2578 = vadd.f32 %v2334, %v2577
      %2579 = vmatmul.bf16.gmra.mxu0 %v2490
      %v2580 = vpop.f32.mrf.mxu0
      %v2581 = vadd.f32 %v2334, %v2580
      %v2582 = vpop.f32.mrf.mxu0
      %v2583 = vadd.f32 %v2334, %v2582
      %2584 = vdwg.mxu0
      %v2585 = vmax.f32 %v2506, 0.0
      %v2586 = vmax.f32 %v2508, 0.0
      %v2587 = vmax.f32 %v2511, 0.0
      %v2588 = vmax.f32 %v2513, 0.0
      %v2589 = vmax.f32 %v2516, 0.0
      %v2590 = vmax.f32 %v2518, 0.0
      %v2591 = vmax.f32 %v2521, 0.0
      %v2592 = vmax.f32 %v2523, 0.0
      %v2593 = vmax.f32 %v2526, 0.0
      %v2594 = vmax.f32 %v2528, 0.0
      %v2595 = vmax.f32 %v2531, 0.0
      %v2596 = vmax.f32 %v2533, 0.0
      %v2597 = vmax.f32 %v2536, 0.0
      %v2598 = vmax.f32 %v2538, 0.0
      %v2599 = vmax.f32 %v2541, 0.0
      %v2600 = vmax.f32 %v2543, 0.0
      %v2601 = vmax.f32 %v2546, 0.0
      %v2602 = vmax.f32 %v2548, 0.0
      %v2603 = vmax.f32 %v2551, 0.0
      %v2604 = vmax.f32 %v2553, 0.0
      %v2605 = vmax.f32 %v2556, 0.0
      %v2606 = vmax.f32 %v2558, 0.0
      %v2607 = vmax.f32 %v2561, 0.0
      %v2608 = vmax.f32 %v2563, 0.0
      %v2609 = vmax.f32 %v2566, 0.0
      %v2610 = vmax.f32 %v2568, 0.0
      %v2611 = vmax.f32 %v2571, 0.0
      %v2612 = vmax.f32 %v2573, 0.0
      %v2613 = vmax.f32 %v2576, 0.0
      %v2614 = vmax.f32 %v2578, 0.0
      %v2615 = vmax.f32 %v2581, 0.0
      %v2616 = vmax.f32 %v2583, 0.0
      %v2617 = vpack.c.bf16 %v2585, %v2585
      %v2618 = vpack.c.bf16 %v2586, %v2586
      %v2619 = vpack.c.bf16 %v2587, %v2587
      %v2620 = vpack.c.bf16 %v2588, %v2588
      %v2621 = vpack.c.bf16 %v2589, %v2589
      %v2622 = vpack.c.bf16 %v2590, %v2590
      %v2623 = vpack.c.bf16 %v2591, %v2591
      %v2624 = vpack.c.bf16 %v2592, %v2592
      %v2625 = vpack.c.bf16 %v2593, %v2593
      %v2626 = vpack.c.bf16 %v2594, %v2594
      %v2627 = vpack.c.bf16 %v2595, %v2595
      %v2628 = vpack.c.bf16 %v2596, %v2596
      %v2629 = vpack.c.bf16 %v2597, %v2597
      %v2630 = vpack.c.bf16 %v2598, %v2598
      %v2631 = vpack.c.bf16 %v2599, %v2599
      %v2632 = vpack.c.bf16 %v2600, %v2600
      %v2633 = vpack.c.bf16 %v2601, %v2601
      %v2634 = vpack.c.bf16 %v2602, %v2602
      %v2635 = vpack.c.bf16 %v2603, %v2603
      %v2636 = vpack.c.bf16 %v2604, %v2604
      %v2637 = vpack.c.bf16 %v2605, %v2605
      %v2638 = vpack.c.bf16 %v2606, %v2606
      %v2639 = vpack.c.bf16 %v2607, %v2607
      %v2640 = vpack.c.bf16 %v2608, %v2608
      %v2641 = vpack.c.bf16 %v2609, %v2609
      %v2642 = vpack.c.bf16 %v2610, %v2610
      %v2643 = vpack.c.bf16 %v2611, %v2611
      %v2644 = vpack.c.bf16 %v2612, %v2612
      %v2645 = vpack.c.bf16 %v2613, %v2613
      %v2646 = vpack.c.bf16 %v2614, %v2614
      %v2647 = vpack.c.bf16 %v2615, %v2615
      %v2648 = vpack.c.bf16 %v2616, %v2616
      %v2681 = vunpack.c.l.b16 %v2617
      %v2682 = vunpack.c.l.b16 %v2618
      %v2683 = vunpack.c.l.b16 %v2619
      %v2684 = vunpack.c.l.b16 %v2620
      %v2685 = vunpack.c.l.b16 %v2621
      %v2686 = vunpack.c.l.b16 %v2622
      %v2687 = vunpack.c.l.b16 %v2623
      %v2688 = vunpack.c.l.b16 %v2624
      %v2689 = vunpack.c.l.b16 %v2625
      %v2690 = vunpack.c.l.b16 %v2626
      %v2691 = vunpack.c.l.b16 %v2627
      %v2692 = vunpack.c.l.b16 %v2628
      %v2693 = vunpack.c.l.b16 %v2629
      %v2694 = vunpack.c.l.b16 %v2630
      %v2695 = vunpack.c.l.b16 %v2631
      %v2696 = vunpack.c.l.b16 %v2632
      %v2697 = vunpack.c.l.b16 %v2633
      %v2698 = vunpack.c.l.b16 %v2634
      %v2699 = vunpack.c.l.b16 %v2635
      %v2700 = vunpack.c.l.b16 %v2636
      %v2701 = vunpack.c.l.b16 %v2637
      %v2702 = vunpack.c.l.b16 %v2638
      %v2703 = vunpack.c.l.b16 %v2639
      %v2704 = vunpack.c.l.b16 %v2640
      %v2705 = vunpack.c.l.b16 %v2641
      %v2706 = vunpack.c.l.b16 %v2642
      %v2707 = vunpack.c.l.b16 %v2643
      %v2708 = vunpack.c.l.b16 %v2644
      %v2709 = vunpack.c.l.b16 %v2645
      %v2710 = vunpack.c.l.b16 %v2646
      %v2711 = vunpack.c.l.b16 %v2647
      %v2712 = vunpack.c.l.b16 %v2648
      %v2713 = vpack.c.b16 %v2682, %v2681
      %v2714 = vpack.c.b16 %v2684, %v2683
      %v2715 = vpack.c.b16 %v2686, %v2685
      %v2716 = vpack.c.b16 %v2688, %v2687
      %v2717 = vpack.c.b16 %v2690, %v2689
      %v2718 = vpack.c.b16 %v2692, %v2691
      %v2719 = vpack.c.b16 %v2694, %v2693
      %v2720 = vpack.c.b16 %v2696, %v2695
      %v2721 = vpack.c.b16 %v2698, %v2697
      %v2722 = vpack.c.b16 %v2700, %v2699
      %v2723 = vpack.c.b16 %v2702, %v2701
      %v2724 = vpack.c.b16 %v2704, %v2703
      %v2725 = vpack.c.b16 %v2706, %v2705
      %v2726 = vpack.c.b16 %v2708, %v2707
      %v2727 = vpack.c.b16 %v2710, %v2709
      %v2728 = vpack.c.b16 %v2712, %v2711
      %2729 = vrot.lane.b32.xlu0 %v381, 8
      %v2730 = vpop.permute.xlu0 %2729
      %2731 = vrot.lane.b32.xlu0 %v382, 8
      %v2732 = vpop.permute.xlu0 %2731
      %2733 = vrot.lane.b32.xlu0 %v383, 8
      %v2734 = vpop.permute.xlu0 %2733
      %2735 = vrot.lane.b32.xlu0 %v384, 8
      %v2736 = vpop.permute.xlu0 %2735
      %2737 = vrot.lane.b32.xlu0 %v385, 8
      %v2738 = vpop.permute.xlu0 %2737
      %2739 = vrot.lane.b32.xlu0 %v386, 8
      %v2740 = vpop.permute.xlu0 %2739
      %2741 = vrot.lane.b32.xlu0 %v387, 8
      %v2742 = vpop.permute.xlu0 %2741
      %2743 = vrot.lane.b32.xlu0 %v388, 8
      %v2744 = vpop.permute.xlu0 %2743
      %2745 = vrot.lane.b32.xlu0 %v389, 8
      %v2746 = vpop.permute.xlu0 %2745
      %2747 = vrot.lane.b32.xlu0 %v390, 8
      %v2748 = vpop.permute.xlu0 %2747
      %2749 = vrot.lane.b32.xlu0 %v391, 8
      %v2750 = vpop.permute.xlu0 %2749
      %2751 = vrot.lane.b32.xlu0 %v392, 8
      %v2752 = vpop.permute.xlu0 %2751
      %2753 = vrot.lane.b32.xlu0 %v393, 8
      %v2754 = vpop.permute.xlu0 %2753
      %2755 = vrot.lane.b32.xlu0 %v394, 8
      %v2756 = vpop.permute.xlu0 %2755
      %2757 = vrot.lane.b32.xlu0 %v395, 8
      %v2758 = vpop.permute.xlu0 %2757
      %2759 = vrot.lane.b32.xlu0 %v396, 8
      %v2760 = vpop.permute.xlu0 %2759
      %v2763 = vsel %vm571, %v2713, %v2730
      %v2766 = vsel %vm571, %v2714, %v2732
      %v2769 = vsel %vm571, %v2715, %v2734
      %v2772 = vsel %vm571, %v2716, %v2736
      %v2775 = vsel %vm571, %v2717, %v2738
      %v2778 = vsel %vm571, %v2718, %v2740
      %v2781 = vsel %vm571, %v2719, %v2742
      %v2784 = vsel %vm571, %v2720, %v2744
      %v2787 = vsel %vm571, %v2721, %v2746
      %v2790 = vsel %vm571, %v2722, %v2748
      %v2793 = vsel %vm571, %v2723, %v2750
      %v2796 = vsel %vm571, %v2724, %v2752
      %v2799 = vsel %vm571, %v2725, %v2754
      %v2802 = vsel %vm571, %v2726, %v2756
      %v2805 = vsel %vm571, %v2727, %v2758
      %v2808 = vsel %vm571, %v2728, %v2760
      %v2809 = vld [vmem:[%s3] sm:$0xf]
      %v2810 = vld [vmem:[%s3 + $0x4] sm:$0x3]
      %v2811 = vld [vmem:[%s6] sm:$0x1]
      %v2813 = vperm.slane %v2811, 0
      %v2817 = vunpack.c.l.b16 %v2809
      %v2818 = vunpack.c.l.b16 %v2810
      %v2819 = vpack.c.b16 %v2818, %v2817
      %vm2820 = vcmask 97280
      %v2821 = vsel %vm2820, %v2763, 0
      %v2823 = vsel %vm2820, %v2766, 0
      %v2825 = vsel %vm2820, %v2769, 0
      %v2827 = vsel %vm2820, %v2772, 0
      %v2829 = vsel %vm2820, %v2775, 0
      %v2831 = vsel %vm2820, %v2778, 0
      %v2833 = vsel %vm2820, %v2781, 0
      %v2835 = vsel %vm2820, %v2784, 0
      %v2837 = vsel %vm2820, %v2787, 0
      %v2839 = vsel %vm2820, %v2790, 0
      %v2841 = vsel %vm2820, %v2793, 0
      %v2843 = vsel %vm2820, %v2796, 0
      %v2845 = vsel %vm2820, %v2799, 0
      %v2847 = vsel %vm2820, %v2802, 0
      %v2849 = vsel %vm2820, %v2805, 0
      %v2851 = vsel %vm2820, %v2808, 0
      %v2854 = vsel %vm1123, %v2819, 0
      %2856 = vmatpush.bf16.msra.mxu0 0
      %2857 = vmatpush.bf16.msra.mxu0 0
      %2858 = vmatpush.bf16.msra.mxu0 0
      %2859 = vmatpush.bf16.msra.mxu0 0
      %2860 = vmatpush.bf16.msra.mxu0 0
      %2861 = vmatpush.bf16.msra.mxu0 0
      %2862 = vmatpush.bf16.msra.mxu0 0
      %2863 = vmatpush.bf16.msra.mxu0 %v2854
      %2864 = vmatmul.bf16.gmra.mxu0 %v2821
      %v2865 = vpop.f32.mrf.mxu0
      %v2866 = vadd.f32 %v2813, %v2865
      %v2867 = vpop.f32.mrf.mxu0
      %v2868 = vadd.f32 %v2813, %v2867
      %2869 = vmatmul.bf16.gmra.mxu0 %v2823
      %v2870 = vpop.f32.mrf.mxu0
      %v2871 = vadd.f32 %v2813, %v2870
      %v2872 = vpop.f32.mrf.mxu0
      %v2873 = vadd.f32 %v2813, %v2872
      %2874 = vmatmul.bf16.gmra.mxu0 %v2825
      %v2875 = vpop.f32.mrf.mxu0
      %v2876 = vadd.f32 %v2813, %v2875
      %v2877 = vpop.f32.mrf.mxu0
      %v2878 = vadd.f32 %v2813, %v2877
      %2879 = vmatmul.bf16.gmra.mxu0 %v2827
      %v2880 = vpop.f32.mrf.mxu0
      %v2881 = vadd.f32 %v2813, %v2880
      %v2882 = vpop.f32.mrf.mxu0
      %v2883 = vadd.f32 %v2813, %v2882
      %2884 = vmatmul.bf16.gmra.mxu0 %v2829
      %v2885 = vpop.f32.mrf.mxu0
      %v2886 = vadd.f32 %v2813, %v2885
      %v2887 = vpop.f32.mrf.mxu0
      %v2888 = vadd.f32 %v2813, %v2887
      %2889 = vmatmul.bf16.gmra.mxu0 %v2831
      %v2890 = vpop.f32.mrf.mxu0
      %v2891 = vadd.f32 %v2813, %v2890
      %v2892 = vpop.f32.mrf.mxu0
      %v2893 = vadd.f32 %v2813, %v2892
      %2894 = vmatmul.bf16.gmra.mxu0 %v2833
      %v2895 = vpop.f32.mrf.mxu0
      %v2896 = vadd.f32 %v2813, %v2895
      %v2897 = vpop.f32.mrf.mxu0
      %v2898 = vadd.f32 %v2813, %v2897
      %2899 = vmatmul.bf16.gmra.mxu0 %v2835
      %v2900 = vpop.f32.mrf.mxu0
      %v2901 = vadd.f32 %v2813, %v2900
      %v2902 = vpop.f32.mrf.mxu0
      %v2903 = vadd.f32 %v2813, %v2902
      %2904 = vmatmul.bf16.gmra.mxu0 %v2837
      %v2905 = vpop.f32.mrf.mxu0
      %v2906 = vadd.f32 %v2813, %v2905
      %v2907 = vpop.f32.mrf.mxu0
      %v2908 = vadd.f32 %v2813, %v2907
      %2909 = vmatmul.bf16.gmra.mxu0 %v2839
      %v2910 = vpop.f32.mrf.mxu0
      %v2911 = vadd.f32 %v2813, %v2910
      %v2912 = vpop.f32.mrf.mxu0
      %v2913 = vadd.f32 %v2813, %v2912
      %2914 = vmatmul.bf16.gmra.mxu0 %v2841
      %v2915 = vpop.f32.mrf.mxu0
      %v2916 = vadd.f32 %v2813, %v2915
      %v2917 = vpop.f32.mrf.mxu0
      %v2918 = vadd.f32 %v2813, %v2917
      %2919 = vmatmul.bf16.gmra.mxu0 %v2843
      %v2920 = vpop.f32.mrf.mxu0
      %v2921 = vadd.f32 %v2813, %v2920
      %v2922 = vpop.f32.mrf.mxu0
      %v2923 = vadd.f32 %v2813, %v2922
      %2924 = vmatmul.bf16.gmra.mxu0 %v2845
      %v2925 = vpop.f32.mrf.mxu0
      %v2926 = vadd.f32 %v2813, %v2925
      %v2927 = vpop.f32.mrf.mxu0
      %v2928 = vadd.f32 %v2813, %v2927
      %2929 = vmatmul.bf16.gmra.mxu0 %v2847
      %v2930 = vpop.f32.mrf.mxu0
      %v2931 = vadd.f32 %v2813, %v2930
      %v2932 = vpop.f32.mrf.mxu0
      %v2933 = vadd.f32 %v2813, %v2932
      %2934 = vmatmul.bf16.gmra.mxu0 %v2849
      %v2935 = vpop.f32.mrf.mxu0
      %v2936 = vadd.f32 %v2813, %v2935
      %v2937 = vpop.f32.mrf.mxu0
      %v2938 = vadd.f32 %v2813, %v2937
      %2939 = vmatmul.bf16.gmra.mxu0 %v2851
      %v2940 = vpop.f32.mrf.mxu0
      %v2941 = vadd.f32 %v2813, %v2940
      %v2942 = vpop.f32.mrf.mxu0
      %v2943 = vadd.f32 %v2813, %v2942
      %2944 = vdwg.mxu0
      %v2945 = vmax.f32 %v2866, 0.0
      %v2946 = vmax.f32 %v2868, 0.0
      %v2947 = vmax.f32 %v2871, 0.0
      %v2948 = vmax.f32 %v2873, 0.0
      %v2949 = vmax.f32 %v2876, 0.0
      %v2950 = vmax.f32 %v2878, 0.0
      %v2951 = vmax.f32 %v2881, 0.0
      %v2952 = vmax.f32 %v2883, 0.0
      %v2953 = vmax.f32 %v2886, 0.0
      %v2954 = vmax.f32 %v2888, 0.0
      %v2955 = vmax.f32 %v2891, 0.0
      %v2956 = vmax.f32 %v2893, 0.0
      %v2957 = vmax.f32 %v2896, 0.0
      %v2958 = vmax.f32 %v2898, 0.0
      %v2959 = vmax.f32 %v2901, 0.0
      %v2960 = vmax.f32 %v2903, 0.0
      %v2961 = vmax.f32 %v2906, 0.0
      %v2962 = vmax.f32 %v2908, 0.0
      %v2963 = vmax.f32 %v2911, 0.0
      %v2964 = vmax.f32 %v2913, 0.0
      %v2965 = vmax.f32 %v2916, 0.0
      %v2966 = vmax.f32 %v2918, 0.0
      %v2967 = vmax.f32 %v2921, 0.0
      %v2968 = vmax.f32 %v2923, 0.0
      %v2969 = vmax.f32 %v2926, 0.0
      %v2970 = vmax.f32 %v2928, 0.0
      %v2971 = vmax.f32 %v2931, 0.0
      %v2972 = vmax.f32 %v2933, 0.0
      %v2973 = vmax.f32 %v2936, 0.0
      %v2974 = vmax.f32 %v2938, 0.0
      %v2975 = vmax.f32 %v2941, 0.0
      %v2976 = vmax.f32 %v2943, 0.0
      %vm2977 = vcmask 261120
      %2978 = vst.msk [vmem:[%s278] sm:$0xff] %vm2977, %v2945
      %2979 = vst.msk [vmem:[%s278 + $0x8] sm:$0xff] %vm2977, %v2946
      %2980 = vst.msk [vmem:[%s278 + $0x10] sm:$0xff] %vm2977, %v2947
      %2981 = vst.msk [vmem:[%s278 + $0x18] sm:$0xff] %vm2977, %v2948
      %2982 = vst.msk [vmem:[%s278 + $0x20] sm:$0xff] %vm2977, %v2949
      %2983 = vst.msk [vmem:[%s278 + $0x28] sm:$0xff] %vm2977, %v2950
      %2984 = vst.msk [vmem:[%s278 + $0x30] sm:$0xff] %vm2977, %v2951
      %2985 = vst.msk [vmem:[%s278 + $0x38] sm:$0xff] %vm2977, %v2952
      %2986 = vst.msk [vmem:[%s278 + $0x40] sm:$0xff] %vm2977, %v2953
      %2987 = vst.msk [vmem:[%s278 + $0x48] sm:$0xff] %vm2977, %v2954
      %2988 = vst.msk [vmem:[%s278 + $0x50] sm:$0xff] %vm2977, %v2955
      %2989 = vst.msk [vmem:[%s278 + $0x58] sm:$0xff] %vm2977, %v2956
      %2990 = vst.msk [vmem:[%s278 + $0x60] sm:$0xff] %vm2977, %v2957
      %2991 = vst.msk [vmem:[%s278 + $0x68] sm:$0xff] %vm2977, %v2958
      %2992 = vst.msk [vmem:[%s278 + $0x70] sm:$0xff] %vm2977, %v2959
      %2993 = vst.msk [vmem:[%s278 + $0x78] sm:$0xff] %vm2977, %v2960
      %2994 = vst.msk [vmem:[%s278 + $0x80] sm:$0xff] %vm2977, %v2961
      %2995 = vst.msk [vmem:[%s278 + $0x88] sm:$0xff] %vm2977, %v2962
      %2996 = vst.msk [vmem:[%s278 + $0x90] sm:$0xff] %vm2977, %v2963
      %2997 = vst.msk [vmem:[%s278 + $0x98] sm:$0xff] %vm2977, %v2964
      %2998 = vst.msk [vmem:[%s278 + $0xa0] sm:$0xff] %vm2977, %v2965
      %2999 = vst.msk [vmem:[%s278 + $0xa8] sm:$0xff] %vm2977, %v2966
      %3000 = vst.msk [vmem:[%s278 + $0xb0] sm:$0xff] %vm2977, %v2967
      %3001 = vst.msk [vmem:[%s278 + $0xb8] sm:$0xff] %vm2977, %v2968
      %3002 = vst.msk [vmem:[%s278 + $0xc0] sm:$0xff] %vm2977, %v2969
      %3003 = vst.msk [vmem:[%s278 + $0xc8] sm:$0xff] %vm2977, %v2970
      %3004 = vst.msk [vmem:[%s278 + $0xd0] sm:$0xff] %vm2977, %v2971
      %3005 = vst.msk [vmem:[%s278 + $0xd8] sm:$0xff] %vm2977, %v2972
      %3006 = vst.msk [vmem:[%s278 + $0xe0] sm:$0xff] %vm2977, %v2973
      %3007 = vst.msk [vmem:[%s278 + $0xe8] sm:$0xff] %vm2977, %v2974
      %3008 = vst.msk [vmem:[%s278 + $0xf0] sm:$0xff] %vm2977, %v2975
      %3009 = vst.msk [vmem:[%s278 + $0xf8] sm:$0xff] %vm2977, %v2976
      %p3010 = scmp.lt.s32.totalorder %s18, 1
      %s3011 = scalar_select %p3010, %s18, 1
      %s3012 = smul.addr %s3011, 32
      %s3013 = smul.addr %s3012, 8
      %s3014 = scalar_lea.vmem %s7, %s3013
      // Predicated region
      $region49: #{tpu_custom_call.1} parent=47 // pred_check
        %p3015 = pneg %p188
      $region50: #{tpu_custom_call.1} parent=47 // pred_check_branch
        %3017 = sbr.rel (%p3015) target = $region52
      $region51: #{tpu_custom_call.1} parent=47 // pred_region
        _
      $region52: #{tpu_custom_call.1} parent=47 // pred_fallthru
        _
    $region48: #{tpu_custom_call.1} parent=5 // pred_fallthru
      _
    %p3018 = scmp.le.s32.totalorder 2, %s13
    // Predicated region
    $region53: #{tpu_custom_call.1} parent=5 // pred_check
      %p3019 = pneg %p3018
    $region54: #{tpu_custom_call.1} parent=5 // pred_check_branch
      %3021 = sbr.rel (%p3019) target = $region56
    $region55: #{tpu_custom_call.1} parent=5 // pred_region
      %s3022 = ssub.s32 %s13, 2
      // Predicated region
      $region57: #{tpu_custom_call.1} parent=55 // pred_check
        %p3023 = pneg %p194
      $region58: #{tpu_custom_call.1} parent=55 // pred_check_branch
        %3025 = sbr.rel (%p3023) target = $region60
      $region59: #{tpu_custom_call.1} parent=55 // pred_region
        %p3026 = scmp.lt.s32.totalorder %s19, 1
        %s3027 = scalar_select %p3026, %s19, 1
        %s3028 = smul.addr %s3027, 32
        %s3029 = smul.addr %s3028, 8
        %s3030 = scalar_lea.vmem %s7, %s3029
      $region60: #{tpu_custom_call.1} parent=55 // pred_fallthru
        _
    $region56: #{tpu_custom_call.1} parent=5 // pred_fallthru
      _
  $region6: #{tpu_custom_call.1} parent=0 // loop_footer
    %s17 = sadd.s32 1, %s13
  $region7: #{tpu_custom_call.1} parent=0 // loop_footer_branch
    %12 = sbr.rel target = $region3
  $region8: #{tpu_custom_call.1} parent=0 // loop_exit
    _

</llo_original>
